<compile_context>
chip_gen: v7x
topology: tpu7x:2x2x1
jax: 0.10.0
libtpu: 0.0.40
codegen_flags: <defaults>
</compile_context>

<pallas_src>
import functools

import jax
import jax.numpy as jnp
from jax.experimental import pallas as pl
from jax.experimental.pallas import tpu as pltpu

HIDDEN1 = 64   # hidden_dim1
HIDDEN2 = 64   # hidden_dim2
OUT_DIM = 2    # out_dim


def _round_up(x, m):
  return (x + m - 1) // m * m


# ----------------------------------------------------------------------------
# Kernel
# ----------------------------------------------------------------------------
def _hetero_gnn_kernel(
    xn_ref,    # [Na_p + Np_p, D1]  stacked (padded) node features: author rows then paper rows
    adj_ref,   # [Na_p + Np_p, Na_p + Np_p]:
               #   rows [0, Np_p)        = [A_writes | A_cites]   (paper destination)
               #   rows [Np_p, Np_p+Na_p) = [A_self  | 0      ]   (author destination)
    wa1_ref,   # [D1, 4*D2] = [W1w_l | W1s_l | W1s_r | Wsk_a]
    wp1_ref,   # [D1, 3*D2] = [W1c_l | (W1w_r + W1c_r) | Wsk_p]
    wa2_ref,   # [D2, 3*D2] = [W2w_l | W2s_l | W2s_r]
    wp2_ref,   # [D2, 2*D2] = [W2c_l | (W2w_r + W2c_r)]
    wfc_ref,   # [D2, 3*D2] = [Wf1_author_half | Wf1_paper_half | Wf2 padded to D2 cols]
    b_ref,     # [8, D2] rows: b_a1, b_p1, bsk_a, bsk_p, b_a2, b_p2, bf1, bf2(padded)
    out_ref,   # [1, OUT_DIM]
    *, num_author, num_paper, na_pad, np_pad,
):
  dot = functools.partial(jnp.dot, preferred_element_type=jnp.float32)
  D = HIDDEN2

  xn = xn_ref[...]
  xa0 = xn[:na_pad, :]            # [Na_p, D1]
  xp0 = xn[na_pad:, :]            # [Np_p, D1]

  adj = adj_ref[...]
  adj_paper = adj[:np_pad, :]          # [Np_p, Na_p + Np_p] = [A_writes | A_cites]
  adj_self = adj[np_pad:, :na_pad]     # [Na_p, Na_p]

  b = b_ref[...]
  b_a1, b_p1 = b[0:1, :], b[1:2, :]
  bsk_a, bsk_p = b[2:3, :], b[3:4, :]
  b_a2, b_p2 = b[4:5, :], b[5:6, :]
  bf1, bf2 = b[6:7, :], b[7:8, :]

  def layer(xa, xp, wa, wp, b_a, b_p):
    # One wide projection per source node type (lin_l / lin_r / extras fused).
    pa = dot(xa, wa)                                   # [Na_p, 3*D or 4*D]
    pp = dot(xp, wp)                                   # [Np_p, 2*D or 3*D]
    # Paper destination: both edge types aggregated with a single matmul
    # against the horizontally stacked adjacency (aggr='sum' pre-folded).
    src = jnp.concatenate([pa[:, :D], pp[:, :D]], axis=0)   # [Na_p+Np_p, D]
    paper = dot(adj_paper, src) + pp[:, D:2 * D] + b_p
    # Author destination: self-loop edge type only.
    author = dot(adj_self, pa[:, D:2 * D]) + pa[:, 2 * D:3 * D] + b_a
    return author, paper, pa, pp

  # ---- conv1 + ReLU (skip projections ride along in the layer-1 stacks) ----
  a1, p1, pa1, pp1 = layer(xa0, xp0, wa1_ref[...], wp1_ref[...], b_a1, b_p1)
  skip_a = pa1[:, 3 * D:4 * D] + bsk_a
  skip_p = pp1[:, 2 * D:3 * D] + bsk_p
  xa1 = jnp.maximum(a1, 0.0)
  xp1 = jnp.maximum(p1, 0.0)

  # ---- conv2 + ReLU + skip --------------------------------------------------
  a2, p2, _, _ = layer(xa1, xp1, wa2_ref[...], wp2_ref[...], b_a2, b_p2)
  xa2 = jnp.maximum(a2, 0.0) + skip_a
  xp2 = jnp.maximum(p2, 0.0) + skip_p

  # ---- global mean pool over TRUE node counts (mask out padded rows) --------
  row_a = jax.lax.broadcasted_iota(jnp.int32, (na_pad, D), 0)
  row_p = jax.lax.broadcasted_iota(jnp.int32, (np_pad, D), 0)
  ma = jnp.sum(jnp.where(row_a < num_author, xa2, 0.0),
               axis=0, keepdims=True) * (1.0 / num_author)        # [1, D]
  mp = jnp.sum(jnp.where(row_p < num_paper, xp2, 0.0),
               axis=0, keepdims=True) * (1.0 / num_paper)         # [1, D]

  # ---- fc head: concat avoided by splitting wf1 into its two halves ---------
  wfc = wfc_ref[...]
  h = jnp.maximum(dot(ma, wfc[:, :D]) + dot(mp, wfc[:, D:2 * D]) + bf1, 0.0)
  logits = dot(h, wfc[:, 2 * D:3 * D]) + bf2          # [1, D], cols >= OUT_DIM are zero-padded
  out_ref[...] = logits[:, :OUT_DIM]


# ----------------------------------------------------------------------------
# Wrapper: pack/pad inputs & parameters, launch one fused kernel invocation
# ----------------------------------------------------------------------------
def explainable_hetero_gnn(x_author, x_paper, a_writes, a_cites, a_self, params):
  (w1w_l, b1w_l, w1w_r, w1c_l, b1c_l, w1c_r, w1s_l, b1s_l, w1s_r,
   w2w_l, b2w_l, w2w_r, w2c_l, b2c_l, w2c_r, w2s_l, b2s_l, w2s_r,
   wsk_a, bsk_a, wsk_p, bsk_p, wf1, bf1, wf2, bf2) = params

  na, np_ = x_author.shape[0], x_paper.shape[0]
  na_pad, np_pad = _round_up(na, 8), _round_up(np_, 8)
  ntot = na_pad + np_pad
  D = HIDDEN2

  def pad2(x, rows, cols):
    return jnp.pad(x, ((0, rows - x.shape[0]), (0, cols - x.shape[1])))

  # Node features: author rows then paper rows, zero-padded to sublane multiples.
  x_nodes = jnp.concatenate([pad2(x_author, na_pad, HIDDEN1),
                             pad2(x_paper, np_pad, HIDDEN1)], axis=0)

  # Adjacencies packed into one array (padded rows/cols are zero).
  adj_paper = jnp.concatenate([pad2(a_writes, np_pad, na_pad),
                               pad2(a_cites, np_pad, np_pad)], axis=1)   # [Np_p, ntot]
  adj_self_row = pad2(a_self, na_pad, ntot)                               # [Na_p, ntot]
  adj_all = jnp.concatenate([adj_paper, adj_self_row], axis=0)            # [ntot, ntot]

  # Packed weight stacks (HeteroConv sum pre-folded: lin_r / biases pre-summed).
  wa1 = jnp.concatenate([w1w_l, w1s_l, w1s_r, wsk_a], axis=1)             # [D1, 4D]
  wp1 = jnp.concatenate([w1c_l, w1w_r + w1c_r, wsk_p], axis=1)            # [D1, 3D]
  wa2 = jnp.concatenate([w2w_l, w2s_l, w2s_r], axis=1)                    # [D2, 3D]
  wp2 = jnp.concatenate([w2c_l, w2w_r + w2c_r], axis=1)                   # [D2, 2D]
  wf2_pad = jnp.pad(wf2, ((0, 0), (0, D - OUT_DIM)))
  wfc = jnp.concatenate([wf1[:D, :], wf1[D:, :], wf2_pad], axis=1)        # [D2, 3D]

  # Packed biases.
  bias_stack = jnp.concatenate(
      [b1s_l, b1w_l + b1c_l, bsk_a, bsk_p, b2s_l, b2w_l + b2c_l, bf1,
       jnp.pad(bf2, ((0, 0), (0, D - OUT_DIM)))], axis=0)                 # [8, D]

  args = [x_nodes, adj_all, wa1, wp1, wa2, wp2, wfc, bias_stack]

  def mm(m, k, n):
    return 2 * m * k * n
  flops = (mm(na_pad, HIDDEN1, 4 * D) + mm(np_pad, HIDDEN1, 3 * D) +      # layer-1 projections
           mm(na_pad, D, 3 * D) + mm(np_pad, D, 2 * D) +                  # layer-2 projections
           2 * (mm(np_pad, ntot, D) + mm(na_pad, na_pad, D)) +            # aggregations x2 layers
           3 * mm(1, D, D))                                               # fc head
  bytes_accessed = sum(int(a.size) * 4 for a in args) + OUT_DIM * 4

  kernel = functools.partial(_hetero_gnn_kernel, num_author=na, num_paper=np_,
                             na_pad=na_pad, np_pad=np_pad)
  vmem = pl.BlockSpec(memory_space=pltpu.MemorySpace.VMEM)
  return pl.pallas_call(
      kernel,
      out_shape=jax.ShapeDtypeStruct((1, OUT_DIM), jnp.float32),
      in_specs=[vmem] * len(args),
      out_specs=vmem,
      cost_estimate=pl.CostEstimate(flops=int(flops), transcendentals=0,
                                    bytes_accessed=int(bytes_accessed)),
  )(*args)


# ----------------------------- glue (plain JAX) ------------------------------
def build_mean_adj(src, dst, n_dst, n_src):
  """Dense row-normalized adjacency so (A @ X_src) == mean of neighbor msgs."""
  a = jnp.zeros((n_dst, n_src), jnp.float32).at[dst, src].add(1.0)
  deg = jnp.sum(a, axis=1, keepdims=True)
  return a / jnp.maximum(deg, 1.0)


def make_params(key):
  """Deterministic synthetic parameters, pre-transposed to [in, out]."""
  params = []

  def lin(k, d_in, d_out, bias=True):
    kw, kb = jax.random.split(k)
    w = jax.random.normal(kw, (d_in, d_out), jnp.float32) * 0.1
    out = [w]
    if bias:
      out.append(jax.random.normal(kb, (1, d_out), jnp.float32) * 0.1)
    return out

  keys = iter(jax.random.split(key, 32))

  # conv1: three SAGEConv(D1 -> D2); each = (W_l, b_l, W_r)
  for _ in range(3):
    w_l, b_l = lin(next(keys), HIDDEN1, HIDDEN2)
    (w_r,) = lin(next(keys), HIDDEN1, HIDDEN2, bias=False)
    params += [w_l, b_l, w_r]
  # conv2: three SAGEConv(D2 -> D2)
  for _ in range(3):
    w_l, b_l = lin(next(keys), HIDDEN2, HIDDEN2)
    (w_r,) = lin(next(keys), HIDDEN2, HIDDEN2, bias=False)
    params += [w_l, b_l, w_r]
  # skip: author, paper  (Linear(D1, D2) with bias)
  params += lin(next(keys), HIDDEN1, HIDDEN2)
  params += lin(next(keys), HIDDEN1, HIDDEN2)
  # fc head: Linear(2*D2, D2), Linear(D2, out_dim)
  params += lin(next(keys), 2 * HIDDEN2, HIDDEN2)
  params += lin(next(keys), HIDDEN2, OUT_DIM)
  return params


def reference_forward(x_author, x_paper, aw, ac, asl, params):
  """Pure-JAX reference mirroring the PyTorch forward (default path)."""
  (w1w_l, b1w_l, w1w_r, w1c_l, b1c_l, w1c_r, w1s_l, b1s_l, w1s_r,
   w2w_l, b2w_l, w2w_r, w2c_l, b2c_l, w2c_r, w2s_l, b2s_l, w2s_r,
   wsk_a, bsk_a, wsk_p, bsk_p, wf1, bf1, wf2, bf2) = params

  def sage(a, xs, xd, wl, bl, wr):
    return (a @ xs) @ wl + bl + xd @ wr

  skip_a = x_author @ wsk_a + bsk_a
  skip_p = x_paper @ wsk_p + bsk_p
  p1 = sage(aw, x_author, x_paper, w1w_l, b1w_l, w1w_r) + \
       sage(ac, x_paper, x_paper, w1c_l, b1c_l, w1c_r)
  a1 = sage(asl, x_author, x_author, w1s_l, b1s_l, w1s_r)
  xa1, xp1 = jnp.maximum(a1, 0.0), jnp.maximum(p1, 0.0)
  p2 = sage(aw, xa1, xp1, w2w_l, b2w_l, w2w_r) + \
       sage(ac, xp1, xp1, w2c_l, b2c_l, w2c_r)
  a2 = sage(asl, xa1, xa1, w2s_l, b2s_l, w2s_r)
  xa2 = jnp.maximum(a2, 0.0) + skip_a
  xp2 = jnp.maximum(p2, 0.0) + skip_p
  pooled = jnp.concatenate([xa2.mean(0, keepdims=True),
                            xp2.mean(0, keepdims=True)], axis=-1)
  h = jnp.maximum(pooled @ wf1 + bf1, 0.0)
  return h @ wf2 + bf2


if __name__ == "__main__":
  key = jax.random.PRNGKey(0)
  k_xa, k_xp, k_ew, k_ec, k_par = jax.random.split(key, 5)

  NUM_AUTHOR, NUM_PAPER = 12, 20
  NUM_WRITES, NUM_CITES = 40, 30

  x_author = jax.random.normal(k_xa, (NUM_AUTHOR, HIDDEN1), jnp.float32)
  x_paper = jax.random.normal(k_xp, (NUM_PAPER, HIDDEN1), jnp.float32)

  # edge_index_dict (deterministic random edges)
  kw1, kw2 = jax.random.split(k_ew)
  writes_src = jax.random.randint(kw1, (NUM_WRITES,), 0, NUM_AUTHOR)
  writes_dst = jax.random.randint(kw2, (NUM_WRITES,), 0, NUM_PAPER)
  kc1, kc2 = jax.random.split(k_ec)
  cites_src = jax.random.randint(kc1, (NUM_CITES,), 0, NUM_PAPER)
  cites_dst = jax.random.randint(kc2, (NUM_CITES,), 0, NUM_PAPER)
  self_idx = jnp.arange(NUM_AUTHOR)  # ('author','self_loop','author')

  a_writes = build_mean_adj(writes_src, writes_dst, NUM_PAPER, NUM_AUTHOR)
  a_cites = build_mean_adj(cites_src, cites_dst, NUM_PAPER, NUM_PAPER)
  a_self = build_mean_adj(self_idx, self_idx, NUM_AUTHOR, NUM_AUTHOR)

  params = make_params(k_par)

  logits = explainable_hetero_gnn(x_author, x_paper, a_writes, a_cites,
                                  a_self, params)
  logits = jax.block_until_ready(logits)

  ref = reference_forward(x_author, x_paper, a_writes, a_cites, a_self, params)
  assert logits.shape == (1, OUT_DIM)
  assert jnp.allclose(logits, ref, rtol=1e-3, atol=1e-3), (logits, ref)

  print("KERNEL_OK")
</pallas_src>

<mosaic_0001>
module attributes {stable_mosaic.version = 11 : i64} {
  func.func @_hetero_gnn_kernel(%arg0: memref<40x64xf32, #tpu.memory_space<vmem>>, %arg1: memref<40x40xf32, #tpu.memory_space<vmem>>, %arg2: memref<64x256xf32, #tpu.memory_space<vmem>>, %arg3: memref<64x192xf32, #tpu.memory_space<vmem>>, %arg4: memref<64x192xf32, #tpu.memory_space<vmem>>, %arg5: memref<64x128xf32, #tpu.memory_space<vmem>>, %arg6: memref<64x192xf32, #tpu.memory_space<vmem>>, %arg7: memref<8x64xf32, #tpu.memory_space<vmem>>, %arg8: memref<1x2xf32, #tpu.memory_space<vmem>>) attributes {dimension_semantics = [], scalar_prefetch = 0 : i64, scratch_operands = 0 : i64, tpu.core_type = #tpu.core_type<tc>} {
    %c0 = arith.constant 0 : index
    %c0_0 = arith.constant 0 : index
    %0 = vector.load %arg0[%c0, %c0_0] : memref<40x64xf32, #tpu.memory_space<vmem>>, vector<40x64xf32>
    %1 = vector.extract_strided_slice %0 {offsets = [0, 0], sizes = [16, 64], strides = [1, 1]} : vector<40x64xf32> to vector<16x64xf32>
    %2 = vector.extract_strided_slice %0 {offsets = [16, 0], sizes = [24, 64], strides = [1, 1]} : vector<40x64xf32> to vector<24x64xf32>
    %c0_1 = arith.constant 0 : index
    %c0_2 = arith.constant 0 : index
    %3 = vector.load %arg1[%c0_1, %c0_2] : memref<40x40xf32, #tpu.memory_space<vmem>>, vector<40x40xf32>
    %4 = vector.extract_strided_slice %3 {offsets = [0, 0], sizes = [24, 40], strides = [1, 1]} : vector<40x40xf32> to vector<24x40xf32>
    %5 = vector.extract_strided_slice %3 {offsets = [24, 0], sizes = [16, 16], strides = [1, 1]} : vector<40x40xf32> to vector<16x16xf32>
    %c0_3 = arith.constant 0 : index
    %c0_4 = arith.constant 0 : index
    %6 = vector.load %arg7[%c0_3, %c0_4] : memref<8x64xf32, #tpu.memory_space<vmem>>, vector<8x64xf32>
    %7 = vector.extract_strided_slice %6 {offsets = [0, 0], sizes = [1, 64], strides = [1, 1]} : vector<8x64xf32> to vector<1x64xf32>
    %8 = vector.extract_strided_slice %6 {offsets = [1, 0], sizes = [1, 64], strides = [1, 1]} : vector<8x64xf32> to vector<1x64xf32>
    %9 = vector.extract_strided_slice %6 {offsets = [2, 0], sizes = [1, 64], strides = [1, 1]} : vector<8x64xf32> to vector<1x64xf32>
    %10 = vector.extract_strided_slice %6 {offsets = [3, 0], sizes = [1, 64], strides = [1, 1]} : vector<8x64xf32> to vector<1x64xf32>
    %11 = vector.extract_strided_slice %6 {offsets = [4, 0], sizes = [1, 64], strides = [1, 1]} : vector<8x64xf32> to vector<1x64xf32>
    %12 = vector.extract_strided_slice %6 {offsets = [5, 0], sizes = [1, 64], strides = [1, 1]} : vector<8x64xf32> to vector<1x64xf32>
    %13 = vector.extract_strided_slice %6 {offsets = [6, 0], sizes = [1, 64], strides = [1, 1]} : vector<8x64xf32> to vector<1x64xf32>
    %14 = vector.extract_strided_slice %6 {offsets = [7, 0], sizes = [1, 64], strides = [1, 1]} : vector<8x64xf32> to vector<1x64xf32>
    %c0_5 = arith.constant 0 : index
    %c0_6 = arith.constant 0 : index
    %15 = vector.load %arg2[%c0_5, %c0_6] : memref<64x256xf32, #tpu.memory_space<vmem>>, vector<64x256xf32>
    %c0_7 = arith.constant 0 : index
    %c0_8 = arith.constant 0 : index
    %16 = vector.load %arg3[%c0_7, %c0_8] : memref<64x192xf32, #tpu.memory_space<vmem>>, vector<64x192xf32>
    %cst = arith.constant dense<0.000000e+00> : vector<16x256xf32>
    %17 = tpu.matmul %1, %15, %cst {dimension_numbers = #tpu.dot_dimension_numbers<[1], [0], [0], [1], [0, 0, 1, 1], [], []>} : vector<16x64xf32>, vector<64x256xf32>, vector<16x256xf32> -> vector<16x256xf32>
    %cst_9 = arith.constant dense<0.000000e+00> : vector<24x192xf32>
    %18 = tpu.matmul %2, %16, %cst_9 {dimension_numbers = #tpu.dot_dimension_numbers<[1], [0], [0], [1], [0, 0, 1, 1], [], []>} : vector<24x64xf32>, vector<64x192xf32>, vector<24x192xf32> -> vector<24x192xf32>
    %19 = vector.extract_strided_slice %17 {offsets = [0, 0], sizes = [16, 64], strides = [1, 1]} : vector<16x256xf32> to vector<16x64xf32>
    %20 = vector.extract_strided_slice %18 {offsets = [0, 0], sizes = [24, 64], strides = [1, 1]} : vector<24x192xf32> to vector<24x64xf32>
    %21 = tpu.concatenate %19, %20 in 0 : vector<16x64xf32>, vector<24x64xf32> -> vector<40x64xf32>
    %cst_10 = arith.constant dense<0.000000e+00> : vector<24x64xf32>
    %22 = tpu.matmul %4, %21, %cst_10 {dimension_numbers = #tpu.dot_dimension_numbers<[1], [0], [0], [1], [0, 0, 1, 1], [], []>} : vector<24x40xf32>, vector<40x64xf32>, vector<24x64xf32> -> vector<24x64xf32>
    %23 = vector.extract_strided_slice %18 {offsets = [0, 64], sizes = [24, 64], strides = [1, 1]} : vector<24x192xf32> to vector<24x64xf32>
    %24 = arith.addf %22, %23 : vector<24x64xf32>
    %25 = vector.broadcast %8 : vector<1x64xf32> to vector<24x64xf32>
    %26 = arith.addf %24, %25 : vector<24x64xf32>
    %27 = vector.extract_strided_slice %17 {offsets = [0, 64], sizes = [16, 64], strides = [1, 1]} : vector<16x256xf32> to vector<16x64xf32>
    %cst_11 = arith.constant dense<0.000000e+00> : vector<16x64xf32>
    %28 = tpu.matmul %5, %27, %cst_11 {dimension_numbers = #tpu.dot_dimension_numbers<[1], [0], [0], [1], [0, 0, 1, 1], [], []>} : vector<16x16xf32>, vector<16x64xf32>, vector<16x64xf32> -> vector<16x64xf32>
    %29 = vector.extract_strided_slice %17 {offsets = [0, 128], sizes = [16, 64], strides = [1, 1]} : vector<16x256xf32> to vector<16x64xf32>
    %30 = arith.addf %28, %29 : vector<16x64xf32>
    %31 = vector.broadcast %7 : vector<1x64xf32> to vector<16x64xf32>
    %32 = arith.addf %30, %31 : vector<16x64xf32>
    %33 = vector.extract_strided_slice %17 {offsets = [0, 192], sizes = [16, 64], strides = [1, 1]} : vector<16x256xf32> to vector<16x64xf32>
    %34 = vector.broadcast %9 : vector<1x64xf32> to vector<16x64xf32>
    %35 = arith.addf %33, %34 : vector<16x64xf32>
    %36 = vector.extract_strided_slice %18 {offsets = [0, 128], sizes = [24, 64], strides = [1, 1]} : vector<24x192xf32> to vector<24x64xf32>
    %37 = vector.broadcast %10 : vector<1x64xf32> to vector<24x64xf32>
    %38 = arith.addf %36, %37 : vector<24x64xf32>
    %cst_12 = arith.constant 0.000000e+00 : f32
    %39 = vector.broadcast %cst_12 : f32 to vector<16x64xf32>
    %40 = arith.maximumf %32, %39 : vector<16x64xf32>
    %cst_13 = arith.constant 0.000000e+00 : f32
    %41 = vector.broadcast %cst_13 : f32 to vector<24x64xf32>
    %42 = arith.maximumf %26, %41 : vector<24x64xf32>
    %c0_14 = arith.constant 0 : index
    %c0_15 = arith.constant 0 : index
    %43 = vector.load %arg4[%c0_14, %c0_15] : memref<64x192xf32, #tpu.memory_space<vmem>>, vector<64x192xf32>
    %c0_16 = arith.constant 0 : index
    %c0_17 = arith.constant 0 : index
    %44 = vector.load %arg5[%c0_16, %c0_17] : memref<64x128xf32, #tpu.memory_space<vmem>>, vector<64x128xf32>
    %cst_18 = arith.constant dense<0.000000e+00> : vector<16x192xf32>
    %45 = tpu.matmul %40, %43, %cst_18 {dimension_numbers = #tpu.dot_dimension_numbers<[1], [0], [0], [1], [0, 0, 1, 1], [], []>} : vector<16x64xf32>, vector<64x192xf32>, vector<16x192xf32> -> vector<16x192xf32>
    %cst_19 = arith.constant dense<0.000000e+00> : vector<24x128xf32>
    %46 = tpu.matmul %42, %44, %cst_19 {dimension_numbers = #tpu.dot_dimension_numbers<[1], [0], [0], [1], [0, 0, 1, 1], [], []>} : vector<24x64xf32>, vector<64x128xf32>, vector<24x128xf32> -> vector<24x128xf32>
    %47 = vector.extract_strided_slice %45 {offsets = [0, 0], sizes = [16, 64], strides = [1, 1]} : vector<16x192xf32> to vector<16x64xf32>
    %48 = vector.extract_strided_slice %46 {offsets = [0, 0], sizes = [24, 64], strides = [1, 1]} : vector<24x128xf32> to vector<24x64xf32>
    %49 = tpu.concatenate %47, %48 in 0 : vector<16x64xf32>, vector<24x64xf32> -> vector<40x64xf32>
    %cst_20 = arith.constant dense<0.000000e+00> : vector<24x64xf32>
    %50 = tpu.matmul %4, %49, %cst_20 {dimension_numbers = #tpu.dot_dimension_numbers<[1], [0], [0], [1], [0, 0, 1, 1], [], []>} : vector<24x40xf32>, vector<40x64xf32>, vector<24x64xf32> -> vector<24x64xf32>
    %51 = vector.extract_strided_slice %46 {offsets = [0, 64], sizes = [24, 64], strides = [1, 1]} : vector<24x128xf32> to vector<24x64xf32>
    %52 = arith.addf %50, %51 : vector<24x64xf32>
    %53 = vector.broadcast %12 : vector<1x64xf32> to vector<24x64xf32>
    %54 = arith.addf %52, %53 : vector<24x64xf32>
    %55 = vector.extract_strided_slice %45 {offsets = [0, 64], sizes = [16, 64], strides = [1, 1]} : vector<16x192xf32> to vector<16x64xf32>
    %cst_21 = arith.constant dense<0.000000e+00> : vector<16x64xf32>
    %56 = tpu.matmul %5, %55, %cst_21 {dimension_numbers = #tpu.dot_dimension_numbers<[1], [0], [0], [1], [0, 0, 1, 1], [], []>} : vector<16x16xf32>, vector<16x64xf32>, vector<16x64xf32> -> vector<16x64xf32>
    %57 = vector.extract_strided_slice %45 {offsets = [0, 128], sizes = [16, 64], strides = [1, 1]} : vector<16x192xf32> to vector<16x64xf32>
    %58 = arith.addf %56, %57 : vector<16x64xf32>
    %59 = vector.broadcast %11 : vector<1x64xf32> to vector<16x64xf32>
    %60 = arith.addf %58, %59 : vector<16x64xf32>
    %cst_22 = arith.constant 0.000000e+00 : f32
    %61 = vector.broadcast %cst_22 : f32 to vector<16x64xf32>
    %62 = arith.maximumf %60, %61 : vector<16x64xf32>
    %63 = arith.addf %62, %35 : vector<16x64xf32>
    %cst_23 = arith.constant 0.000000e+00 : f32
    %64 = vector.broadcast %cst_23 : f32 to vector<24x64xf32>
    %65 = arith.maximumf %54, %64 : vector<24x64xf32>
    %66 = arith.addf %65, %38 : vector<24x64xf32>
    %67 = tpu.iota {dimensions = array<i32: 0>} : vector<16x64xi32>
    %68 = tpu.iota {dimensions = array<i32: 0>} : vector<24x64xi32>
    %c12_i32 = arith.constant 12 : i32
    %69 = vector.broadcast %c12_i32 : i32 to vector<16x64xi32>
    %70 = arith.cmpi slt, %67, %69 : vector<16x64xi32>
    %cst_24 = arith.constant 0.000000e+00 : f32
    %71 = vector.broadcast %cst_24 : f32 to vector<16x64xf32>
    %72 = arith.select %70, %63, %71 : vector<16x64xi1>, vector<16x64xf32>
    %cst_25 = arith.constant dense<0.000000e+00> : vector<64xf32>
    %73 = vector.multi_reduction <add>, %72, %cst_25 [0] : vector<16x64xf32> to vector<64xf32>
    %74 = vector.shape_cast %73 : vector<64xf32> to vector<1x64xf32>
    %cst_26 = arith.constant 0.0833333358 : f32
    %75 = vector.broadcast %cst_26 : f32 to vector<1x64xf32>
    %76 = arith.mulf %74, %75 : vector<1x64xf32>
    %c20_i32 = arith.constant 20 : i32
    %77 = vector.broadcast %c20_i32 : i32 to vector<24x64xi32>
    %78 = arith.cmpi slt, %68, %77 : vector<24x64xi32>
    %cst_27 = arith.constant 0.000000e+00 : f32
    %79 = vector.broadcast %cst_27 : f32 to vector<24x64xf32>
    %80 = arith.select %78, %66, %79 : vector<24x64xi1>, vector<24x64xf32>
    %cst_28 = arith.constant dense<0.000000e+00> : vector<64xf32>
    %81 = vector.multi_reduction <add>, %80, %cst_28 [0] : vector<24x64xf32> to vector<64xf32>
    %82 = vector.shape_cast %81 : vector<64xf32> to vector<1x64xf32>
    %cst_29 = arith.constant 5.000000e-02 : f32
    %83 = vector.broadcast %cst_29 : f32 to vector<1x64xf32>
    %84 = arith.mulf %82, %83 : vector<1x64xf32>
    %c0_30 = arith.constant 0 : index
    %c0_31 = arith.constant 0 : index
    %85 = vector.load %arg6[%c0_30, %c0_31] : memref<64x192xf32, #tpu.memory_space<vmem>>, vector<64x192xf32>
    %86 = vector.extract_strided_slice %85 {offsets = [0, 0], sizes = [64, 64], strides = [1, 1]} : vector<64x192xf32> to vector<64x64xf32>
    %cst_32 = arith.constant dense<0.000000e+00> : vector<1x64xf32>
    %87 = tpu.matmul %76, %86, %cst_32 {dimension_numbers = #tpu.dot_dimension_numbers<[1], [0], [0], [1], [0, 0, 1, 1], [], []>} : vector<1x64xf32>, vector<64x64xf32>, vector<1x64xf32> -> vector<1x64xf32>
    %88 = vector.extract_strided_slice %85 {offsets = [0, 64], sizes = [64, 64], strides = [1, 1]} : vector<64x192xf32> to vector<64x64xf32>
    %cst_33 = arith.constant dense<0.000000e+00> : vector<1x64xf32>
    %89 = tpu.matmul %84, %88, %cst_33 {dimension_numbers = #tpu.dot_dimension_numbers<[1], [0], [0], [1], [0, 0, 1, 1], [], []>} : vector<1x64xf32>, vector<64x64xf32>, vector<1x64xf32> -> vector<1x64xf32>
    %90 = arith.addf %87, %89 : vector<1x64xf32>
    %91 = arith.addf %90, %13 : vector<1x64xf32>
    %cst_34 = arith.constant 0.000000e+00 : f32
    %92 = vector.broadcast %cst_34 : f32 to vector<1x64xf32>
    %93 = arith.maximumf %91, %92 : vector<1x64xf32>
    %94 = vector.extract_strided_slice %85 {offsets = [0, 128], sizes = [64, 64], strides = [1, 1]} : vector<64x192xf32> to vector<64x64xf32>
    %cst_35 = arith.constant dense<0.000000e+00> : vector<1x64xf32>
    %95 = tpu.matmul %93, %94, %cst_35 {dimension_numbers = #tpu.dot_dimension_numbers<[1], [0], [0], [1], [0, 0, 1, 1], [], []>} : vector<1x64xf32>, vector<64x64xf32>, vector<1x64xf32> -> vector<1x64xf32>
    %96 = arith.addf %95, %14 : vector<1x64xf32>
    %97 = vector.extract_strided_slice %96 {offsets = [0, 0], sizes = [1, 2], strides = [1, 1]} : vector<1x64xf32> to vector<1x2xf32>
    %c0_36 = arith.constant 0 : index
    %c0_37 = arith.constant 0 : index
    %98 = vector.load %arg8[%c0_36, %c0_37] : memref<1x2xf32, #tpu.memory_space<vmem>>, vector<1x2xf32>
    tpu.vector_store %arg8[%c0_36, %c0_37], %97 {strides = array<i32>} : memref<1x2xf32, #tpu.memory_space<vmem>>, vector<1x2xf32>,
    return
  }
}

</mosaic_0001>

<llo_original>
// kernel: tpu_custom_call.1
$region0: #{tpu_custom_call.1}
  #allocation0 [shape = 'u32[]', space=smem, size = 0x4, offset = 0x4, fixed_abs, tag = 'smem constant byte address 0x4 - core index']
  #allocation1 [shape = 'u32[144,128]{1,0:T(1,128)}', space=vmem, size = 0x12000, scoped, tag = 'internal scratch']
  %s0 = inlined_call_operand.hbm [shape: f32[40,64], index: 0, kind: input, shape index: {}]
  %s1 = inlined_call_operand.hbm [shape: f32[40,40], index: 1, kind: input, shape index: {}]
  %s2 = inlined_call_operand.hbm [shape: f32[64,256], index: 2, kind: input, shape index: {}]
  %s3 = inlined_call_operand.hbm [shape: f32[64,192], index: 3, kind: input, shape index: {}]
  %s4 = inlined_call_operand.hbm [shape: f32[64,192], index: 4, kind: input, shape index: {}]
  %s5 = inlined_call_operand.hbm [shape: f32[64,128], index: 5, kind: input, shape index: {}]
  %s6 = inlined_call_operand.hbm [shape: f32[64,192], index: 6, kind: input, shape index: {}]
  %s7 = inlined_call_operand.vmem [shape: f32[8,64], index: 7, kind: input, shape index: {}]
  %s8 = inlined_call_operand.hbm [shape: f32[1,2], index: 8, kind: output, shape index: {}]
  %s9 = sld [smem:[#allocation0]]
  $region70: #{tpu_custom_call.1} parent=0
    _
  %s11 = ssub.s32 1, %s9
  %s12 = scalar_select 0, %s11, %s9
  $region1: #{tpu_custom_call.1} parent=0
    #allocation2 [shape = 'u8[20480]{0}', space=vmem, size = 0x5000, scoped, tag = 'input window, operand 0, single buffered']
    #allocation3 [shape = 's32[1]{0}', space=sflag, size = 0x4, scoped, tag = 'scoped memory for tpu_custom_call.1']
    #allocation4 [shape = 's32[1]{0}', space=sflag, size = 0x4, scoped, tag = 'scoped memory for tpu_custom_call.1']
    #allocation5 [shape = 'u8[20480]{0}', space=vmem, size = 0x5000, scoped, tag = 'input window, operand 1, single buffered']
    #allocation6 [shape = 's32[1]{0}', space=sflag, size = 0x4, scoped, tag = 'scoped memory for tpu_custom_call.1']
    #allocation7 [shape = 'u8[65536]{0}', space=vmem, size = 0x10000, scoped, tag = 'input window, operand 2, single buffered']
    #allocation8 [shape = 'u8[65536]{0}', space=vmem, size = 0x10000, scoped, tag = 'input window, operand 3, single buffered']
    #allocation9 [shape = 's32[1]{0}', space=sflag, size = 0x4, scoped, tag = 'scoped memory for tpu_custom_call.1']
    #allocation10 [shape = 'u8[65536]{0}', space=vmem, size = 0x10000, scoped, tag = 'input window, operand 4, single buffered']
    #allocation11 [shape = 'u8[32768]{0}', space=vmem, size = 0x8000, scoped, tag = 'input window, operand 5, single buffered']
    #allocation12 [shape = 's32[1]{0}', space=sflag, size = 0x4, scoped, tag = 'scoped memory for tpu_custom_call.1']
    #allocation13 [shape = 'u8[65536]{0}', space=vmem, size = 0x10000, scoped, tag = 'input window, operand 6, single buffered']
    #allocation14 [shape = 'u8[512]{0}', space=vmem, size = 0x400, scoped, tag = 'output window, operand 0, single buffered']
    %13 = vsyncpa [#allocation3], 0
    %14 = vsyncpa [#allocation6], 0
    %15 = vsyncpa [#allocation9], 0
    %16 = vsyncpa [#allocation12], 0
    %17 = vsyncpa [#allocation4], 0
    // Predicated region
    $region2: #{tpu_custom_call.1} parent=1 // pred_check
      _
    $region3: #{tpu_custom_call.1} parent=1 // pred_check_branch
      %19 = sbr.rel (0) target = $region5
    $region4: #{tpu_custom_call.1} parent=1 // pred_region
      %s21 = ssub.s32 640, 640
      %22 = vsyncadd [#allocation3], %s21
      %s23 = sshll.u32 [#allocation2], 4
      %s24 = int_to_ptr.vmem [resolvable:$true] %s23
      %29 = dma.hbm_to_vmem [thread:$0]  %s0, 640, %s24, [#allocation3], 128, 128, 8
    $region5: #{tpu_custom_call.1} parent=1 // pred_fallthru
      _
    // Predicated region
    $region6: #{tpu_custom_call.1} parent=1 // pred_check
      _
    $region7: #{tpu_custom_call.1} parent=1 // pred_check_branch
      %31 = sbr.rel (0) target = $region9
    $region8: #{tpu_custom_call.1} parent=1 // pred_region
      %s33 = ssub.s32 640, 640
      %34 = vsyncadd [#allocation6], %s33
      %s35 = sshll.u32 [#allocation5], 4
      %s36 = int_to_ptr.vmem [resolvable:$true] %s35
      %41 = dma.hbm_to_vmem [thread:$0]  %s1, 640, %s36, [#allocation6], 128, 128, 8
    $region9: #{tpu_custom_call.1} parent=1 // pred_fallthru
      _
    // Predicated region
    $region10: #{tpu_custom_call.1} parent=1 // pred_check
      _
    $region11: #{tpu_custom_call.1} parent=1 // pred_check_branch
      %43 = sbr.rel (0) target = $region13
    $region12: #{tpu_custom_call.1} parent=1 // pred_region
      %s45 = ssub.s32 2048, 2048
      %46 = vsyncadd [#allocation6], %s45
      %s47 = sshll.u32 [#allocation7], 4
      %s48 = int_to_ptr.vmem [resolvable:$true] %s47
      %53 = dma.hbm_to_vmem [thread:$0]  %s2, 2048, %s48, [#allocation6], 256, 256, 16
    $region13: #{tpu_custom_call.1} parent=1 // pred_fallthru
      _
    // Predicated region
    $region14: #{tpu_custom_call.1} parent=1 // pred_check
      _
    $region15: #{tpu_custom_call.1} parent=1 // pred_check_branch
      %55 = sbr.rel (0) target = $region17
    $region16: #{tpu_custom_call.1} parent=1 // pred_region
      %s57 = ssub.s32 2048, 2048
      %58 = vsyncadd [#allocation9], %s57
      %s59 = sshll.u32 [#allocation8], 4
      %s60 = int_to_ptr.vmem [resolvable:$true] %s59
      %65 = dma.hbm_to_vmem [thread:$0]  %s3, 2048, %s60, [#allocation9], 256, 256, 16
    $region17: #{tpu_custom_call.1} parent=1 // pred_fallthru
      _
    // Predicated region
    $region18: #{tpu_custom_call.1} parent=1 // pred_check
      _
    $region19: #{tpu_custom_call.1} parent=1 // pred_check_branch
      %67 = sbr.rel (0) target = $region21
    $region20: #{tpu_custom_call.1} parent=1 // pred_region
      %s69 = ssub.s32 2048, 2048
      %70 = vsyncadd [#allocation9], %s69
      %s71 = sshll.u32 [#allocation10], 4
      %s72 = int_to_ptr.vmem [resolvable:$true] %s71
      %77 = dma.hbm_to_vmem [thread:$0]  %s4, 2048, %s72, [#allocation9], 256, 256, 16
    $region21: #{tpu_custom_call.1} parent=1 // pred_fallthru
      _
    // Predicated region
    $region22: #{tpu_custom_call.1} parent=1 // pred_check
      _
    $region23: #{tpu_custom_call.1} parent=1 // pred_check_branch
      %79 = sbr.rel (0) target = $region25
    $region24: #{tpu_custom_call.1} parent=1 // pred_region
      %s81 = ssub.s32 1024, 1024
      %82 = vsyncadd [#allocation12], %s81
      %s83 = sshll.u32 [#allocation11], 4
      %s84 = int_to_ptr.vmem [resolvable:$true] %s83
      %89 = dma.hbm_to_vmem [thread:$0]  %s5, 1024, %s84, [#allocation12], 128, 128, 8
    $region25: #{tpu_custom_call.1} parent=1 // pred_fallthru
      _
    // Predicated region
    $region26: #{tpu_custom_call.1} parent=1 // pred_check
      _
    $region27: #{tpu_custom_call.1} parent=1 // pred_check_branch
      %91 = sbr.rel (0) target = $region29
    $region28: #{tpu_custom_call.1} parent=1 // pred_region
      %s93 = ssub.s32 2048, 2048
      %94 = vsyncadd [#allocation12], %s93
      %s95 = sshll.u32 [#allocation13], 4
      %s96 = int_to_ptr.vmem [resolvable:$true] %s95
      %101 = dma.hbm_to_vmem [thread:$0]  %s6, 2048, %s96, [#allocation12], 256, 256, 16
    $region29: #{tpu_custom_call.1} parent=1 // pred_fallthru
      _
    // Predicated region
    $region30: #{tpu_custom_call.1} parent=1 // pred_check
      _
    $region31: #{tpu_custom_call.1} parent=1 // pred_check_branch
      %103 = sbr.rel (0) target = $region33
    $region32: #{tpu_custom_call.1} parent=1 // pred_region
      _
    $region33: #{tpu_custom_call.1} parent=1 // pred_fallthru
      _
    // Predicated region
    $region34: #{tpu_custom_call.1} parent=1 // pred_check
      _
    $region35: #{tpu_custom_call.1} parent=1 // pred_check_branch
      %105 = sbr.rel (0) target = $region37
    $region36: #{tpu_custom_call.1} parent=1 // pred_region
      %106 = dma.done [#allocation3], 640
    $region37: #{tpu_custom_call.1} parent=1 // pred_fallthru
      _
    // Predicated region
    $region38: #{tpu_custom_call.1} parent=1 // pred_check
      _
    $region39: #{tpu_custom_call.1} parent=1 // pred_check_branch
      %108 = sbr.rel (0) target = $region41
    $region40: #{tpu_custom_call.1} parent=1 // pred_region
      %109 = dma.done [#allocation6], 640
    $region41: #{tpu_custom_call.1} parent=1 // pred_fallthru
      _
    // Predicated region
    $region42: #{tpu_custom_call.1} parent=1 // pred_check
      _
    $region43: #{tpu_custom_call.1} parent=1 // pred_check_branch
      %111 = sbr.rel (0) target = $region45
    $region44: #{tpu_custom_call.1} parent=1 // pred_region
      %112 = dma.done [#allocation6], 2048
    $region45: #{tpu_custom_call.1} parent=1 // pred_fallthru
      _
    // Predicated region
    $region46: #{tpu_custom_call.1} parent=1 // pred_check
      _
    $region47: #{tpu_custom_call.1} parent=1 // pred_check_branch
      %114 = sbr.rel (0) target = $region49
    $region48: #{tpu_custom_call.1} parent=1 // pred_region
      %115 = dma.done [#allocation9], 2048
    $region49: #{tpu_custom_call.1} parent=1 // pred_fallthru
      _
    // Predicated region
    $region50: #{tpu_custom_call.1} parent=1 // pred_check
      _
    $region51: #{tpu_custom_call.1} parent=1 // pred_check_branch
      %117 = sbr.rel (0) target = $region53
    $region52: #{tpu_custom_call.1} parent=1 // pred_region
      %118 = dma.done [#allocation9], 2048
    $region53: #{tpu_custom_call.1} parent=1 // pred_fallthru
      _
    // Predicated region
    $region54: #{tpu_custom_call.1} parent=1 // pred_check
      _
    $region55: #{tpu_custom_call.1} parent=1 // pred_check_branch
      %120 = sbr.rel (0) target = $region57
    $region56: #{tpu_custom_call.1} parent=1 // pred_region
      %121 = dma.done [#allocation12], 1024
    $region57: #{tpu_custom_call.1} parent=1 // pred_fallthru
      _
    // Predicated region
    $region58: #{tpu_custom_call.1} parent=1 // pred_check
      _
    $region59: #{tpu_custom_call.1} parent=1 // pred_check_branch
      %123 = sbr.rel (0) target = $region61
    $region60: #{tpu_custom_call.1} parent=1 // pred_region
      %124 = dma.done [#allocation12], 2048
    $region61: #{tpu_custom_call.1} parent=1 // pred_fallthru
      _
    %v125 = vld [vmem:[#allocation2] sm:$0xff]
    %v126 = vld [vmem:[#allocation2 + $0x8] sm:$0xff]
    %v127 = vld [vmem:[#allocation2 + $0x10] sm:$0xff]
    %v128 = vld [vmem:[#allocation2 + $0x18] sm:$0xff]
    %v129 = vld [vmem:[#allocation2 + $0x20] sm:$0xff]
    %v130 = vld [vmem:[#allocation5] sm:$0xff]
    %v131 = vld [vmem:[#allocation5 + $0x8] sm:$0xff]
    %v132 = vld [vmem:[#allocation5 + $0x10] sm:$0xff]
    %v133 = vld [vmem:[#allocation5 + $0x18] sm:$0xff]
    %v134 = vld [vmem:[#allocation5 + $0x20] sm:$0xff]
    %v135 = vld [vmem:[%s7] sm:$0xff]
    %v136 = vld [vmem:[#allocation7] sm:$0xff]
    %v137 = vld [vmem:[#allocation7 + $0x8] sm:$0xff]
    %v138 = vld [vmem:[#allocation7 + $0x10] sm:$0xff]
    %v139 = vld [vmem:[#allocation7 + $0x18] sm:$0xff]
    %v140 = vld [vmem:[#allocation7 + $0x20] sm:$0xff]
    %v141 = vld [vmem:[#allocation7 + $0x28] sm:$0xff]
    %v142 = vld [vmem:[#allocation7 + $0x30] sm:$0xff]
    %v143 = vld [vmem:[#allocation7 + $0x38] sm:$0xff]
    %v144 = vld [vmem:[#allocation7 + $0x40] sm:$0xff]
    %v145 = vld [vmem:[#allocation7 + $0x48] sm:$0xff]
    %v146 = vld [vmem:[#allocation7 + $0x50] sm:$0xff]
    %v147 = vld [vmem:[#allocation7 + $0x58] sm:$0xff]
    %v148 = vld [vmem:[#allocation7 + $0x60] sm:$0xff]
    %v149 = vld [vmem:[#allocation7 + $0x68] sm:$0xff]
    %v150 = vld [vmem:[#allocation7 + $0x70] sm:$0xff]
    %v151 = vld [vmem:[#allocation7 + $0x78] sm:$0xff]
    %v152 = vld [vmem:[#allocation8] sm:$0xff]
    %v153 = vld [vmem:[#allocation8 + $0x8] sm:$0xff]
    %v154 = vld [vmem:[#allocation8 + $0x10] sm:$0xff]
    %v155 = vld [vmem:[#allocation8 + $0x18] sm:$0xff]
    %v156 = vld [vmem:[#allocation8 + $0x20] sm:$0xff]
    %v157 = vld [vmem:[#allocation8 + $0x28] sm:$0xff]
    %v158 = vld [vmem:[#allocation8 + $0x30] sm:$0xff]
    %v159 = vld [vmem:[#allocation8 + $0x38] sm:$0xff]
    %v160 = vld [vmem:[#allocation8 + $0x40] sm:$0xff]
    %v161 = vld [vmem:[#allocation8 + $0x48] sm:$0xff]
    %v162 = vld [vmem:[#allocation8 + $0x50] sm:$0xff]
    %v163 = vld [vmem:[#allocation8 + $0x58] sm:$0xff]
    %v164 = vld [vmem:[#allocation8 + $0x60] sm:$0xff]
    %v165 = vld [vmem:[#allocation8 + $0x68] sm:$0xff]
    %v166 = vld [vmem:[#allocation8 + $0x70] sm:$0xff]
    %v167 = vld [vmem:[#allocation8 + $0x78] sm:$0xff]
    %vm168 = vcmask 523264
    %v170 = vsel %vm168, %v125, 0
    %v173 = vsel %vm168, %v126, 0
    %175 = vmatprep.subr.mxu0 %v137
    %176 = vmatpush1.msra.mxu0 %v136
    %177 = vmatprep.subr.mxu0 %v139
    %178 = vmatpush1.msra.mxu0 %v138
    %179 = vmatprep.subr.mxu0 %v141
    %180 = vmatpush1.msra.mxu0 %v140
    %181 = vmatprep.subr.mxu0 %v143
    %182 = vmatpush1.msra.mxu0 %v142
    %183 = vmatprep.subr.mxu0 %v145
    %184 = vmatpush1.msra.mxu0 %v144
    %185 = vmatprep.subr.mxu0 %v147
    %186 = vmatpush1.msra.mxu0 %v146
    %187 = vmatprep.subr.mxu0 %v149
    %188 = vmatpush1.msra.mxu0 %v148
    %189 = vmatprep.subr.mxu0 %v151
    %190 = vmatpush1.msra.mxu0 %v150
    %191 = vmatprep.subr.mxu0 0.0
    %192 = vmatpush1.msra.mxu0 0.0
    %193 = vmatprep.subr.mxu0 0.0
    %194 = vmatpush1.msra.mxu0 0.0
    %195 = vmatprep.subr.mxu0 0.0
    %196 = vmatpush1.msra.mxu0 0.0
    %197 = vmatprep.subr.mxu0 0.0
    %198 = vmatpush1.msra.mxu0 0.0
    %199 = vmatprep.subr.mxu0 0.0
    %200 = vmatpush1.msra.mxu0 0.0
    %201 = vmatprep.subr.mxu0 0.0
    %202 = vmatpush1.msra.mxu0 0.0
    %203 = vmatprep.subr.mxu0 0.0
    %204 = vmatpush1.msra.mxu0 0.0
    %205 = vmatprep.subr.mxu0 0.0
    %206 = vmatpush1.msra.mxu0 0.0
    %207 = vmatprep.subr.mxu0 0.0
    %208 = vmatpush1.msra.mxu0 0.0
    %209 = vmatprep.subr.mxu0 0.0
    %210 = vmatpush1.msra.mxu0 0.0
    %211 = vmatprep.subr.mxu0 0.0
    %212 = vmatpush1.msra.mxu0 0.0
    %213 = vmatprep.subr.mxu0 0.0
    %214 = vmatpush1.msra.mxu0 0.0
    %215 = vmatprep.subr.mxu0 0.0
    %216 = vmatpush1.msra.mxu0 0.0
    %217 = vmatprep.subr.mxu0 0.0
    %218 = vmatpush1.msra.mxu0 0.0
    %219 = vmatprep.subr.mxu0 0.0
    %220 = vmatpush1.msra.mxu0 0.0
    %221 = vmatprep.subr.mxu0 0.0
    %222 = vmatpush1.msra.mxu0 0.0
    %223 = vmatprep.subr.mxu0 0.0
    %224 = vmatpush1.msra.mxu0 0.0
    %225 = vmatprep.subr.mxu0 0.0
    %226 = vmatpush1.msra.mxu0 0.0
    %227 = vmatprep.subr.mxu0 0.0
    %228 = vmatpush1.msra.mxu0 0.0
    %229 = vmatprep.subr.mxu0 0.0
    %230 = vmatpush1.msra.mxu0 0.0
    %231 = vmatprep.subr.mxu0 0.0
    %232 = vmatpush1.msra.mxu0 0.0
    %233 = vmatprep.subr.mxu0 0.0
    %234 = vmatpush1.msra.mxu0 0.0
    %235 = vmatprep.subr.mxu0 0.0
    %236 = vmatpush1.msra.mxu0 0.0
    %237 = vmatprep.subr.mxu0 0.0
    %238 = vmatpush1.msra.mxu0 0.0
    %239 = vmatprep.mubr.f32.mxu0 0.0
    %240 = vmatmul.mubr.f32.gmra.mrb[0].mxu0 %v170
    %v241 = vpop.f32.mrb[0].mxu0
    %v242 = vadd.f32 0.0, %v241
    %v243 = vpop.f32.mrb[0].mxu0
    %v244 = vadd.f32 0.0, %v243
    %245 = vmatprep.mubr.f32.mxu0 0.0
    %246 = vmatmul.mubr.f32.gmra.mrb[0].mxu0 %v173
    %v247 = vpop.f32.mrb[0].mxu0
    %v248 = vadd.f32 0.0, %v247
    %v249 = vpop.f32.mrb[0].mxu0
    %v250 = vadd.f32 0.0, %v249
    %251 = vdwg.mxu0
    %v253 = vsel %vm168, %v127, 0
    %v256 = vsel %vm168, %v128, 0
    %v259 = vsel %vm168, %v129, 0
    %261 = vmatprep.subr.mxu0 %v153
    %262 = vmatpush1.msra.mxu0 %v152
    %263 = vmatprep.subr.mxu0 %v155
    %264 = vmatpush1.msra.mxu0 %v154
    %265 = vmatprep.subr.mxu0 %v157
    %266 = vmatpush1.msra.mxu0 %v156
    %267 = vmatprep.subr.mxu0 %v159
    %268 = vmatpush1.msra.mxu0 %v158
    %269 = vmatprep.subr.mxu0 %v161
    %270 = vmatpush1.msra.mxu0 %v160
    %271 = vmatprep.subr.mxu0 %v163
    %272 = vmatpush1.msra.mxu0 %v162
    %273 = vmatprep.subr.mxu0 %v165
    %274 = vmatpush1.msra.mxu0 %v164
    %275 = vmatprep.subr.mxu0 %v167
    %276 = vmatpush1.msra.mxu0 %v166
    %277 = vmatprep.subr.mxu0 0.0
    %278 = vmatpush1.msra.mxu0 0.0
    %279 = vmatprep.subr.mxu0 0.0
    %280 = vmatpush1.msra.mxu0 0.0
    %281 = vmatprep.subr.mxu0 0.0
    %282 = vmatpush1.msra.mxu0 0.0
    %283 = vmatprep.subr.mxu0 0.0
    %284 = vmatpush1.msra.mxu0 0.0
    %285 = vmatprep.subr.mxu0 0.0
    %286 = vmatpush1.msra.mxu0 0.0
    %287 = vmatprep.subr.mxu0 0.0
    %288 = vmatpush1.msra.mxu0 0.0
    %289 = vmatprep.subr.mxu0 0.0
    %290 = vmatpush1.msra.mxu0 0.0
    %291 = vmatprep.subr.mxu0 0.0
    %292 = vmatpush1.msra.mxu0 0.0
    %293 = vmatprep.subr.mxu0 0.0
    %294 = vmatpush1.msra.mxu0 0.0
    %295 = vmatprep.subr.mxu0 0.0
    %296 = vmatpush1.msra.mxu0 0.0
    %297 = vmatprep.subr.mxu0 0.0
    %298 = vmatpush1.msra.mxu0 0.0
    %299 = vmatprep.subr.mxu0 0.0
    %300 = vmatpush1.msra.mxu0 0.0
    %301 = vmatprep.subr.mxu0 0.0
    %302 = vmatpush1.msra.mxu0 0.0
    %303 = vmatprep.subr.mxu0 0.0
    %304 = vmatpush1.msra.mxu0 0.0
    %305 = vmatprep.subr.mxu0 0.0
    %306 = vmatpush1.msra.mxu0 0.0
    %307 = vmatprep.subr.mxu0 0.0
    %308 = vmatpush1.msra.mxu0 0.0
    %309 = vmatprep.subr.mxu0 0.0
    %310 = vmatpush1.msra.mxu0 0.0
    %311 = vmatprep.subr.mxu0 0.0
    %312 = vmatpush1.msra.mxu0 0.0
    %313 = vmatprep.subr.mxu0 0.0
    %314 = vmatpush1.msra.mxu0 0.0
    %315 = vmatprep.subr.mxu0 0.0
    %316 = vmatpush1.msra.mxu0 0.0
    %317 = vmatprep.subr.mxu0 0.0
    %318 = vmatpush1.msra.mxu0 0.0
    %319 = vmatprep.subr.mxu0 0.0
    %320 = vmatpush1.msra.mxu0 0.0
    %321 = vmatprep.subr.mxu0 0.0
    %322 = vmatpush1.msra.mxu0 0.0
    %323 = vmatprep.subr.mxu0 0.0
    %324 = vmatpush1.msra.mxu0 0.0
    %325 = vmatprep.mubr.f32.mxu0 0.0
    %326 = vmatmul.mubr.f32.gmra.mrb[0].mxu0 %v253
    %v327 = vpop.f32.mrb[0].mxu0
    %v328 = vadd.f32 0.0, %v327
    %v329 = vpop.f32.mrb[0].mxu0
    %v330 = vadd.f32 0.0, %v329
    %331 = vmatprep.mubr.f32.mxu0 0.0
    %332 = vmatmul.mubr.f32.gmra.mrb[0].mxu0 %v256
    %v333 = vpop.f32.mrb[0].mxu0
    %v334 = vadd.f32 0.0, %v333
    %v335 = vpop.f32.mrb[0].mxu0
    %v336 = vadd.f32 0.0, %v335
    %337 = vmatprep.mubr.f32.mxu0 0.0
    %338 = vmatmul.mubr.f32.gmra.mrb[0].mxu0 %v259
    %v339 = vpop.f32.mrb[0].mxu0
    %v340 = vadd.f32 0.0, %v339
    %v341 = vpop.f32.mrb[0].mxu0
    %v342 = vadd.f32 0.0, %v341
    %343 = vdwg.mxu0
    %347 = vrot.lane.b32.xlu0 %v328, 64
    %v348 = vpop.permute.xlu0 %347
    %349 = vrot.lane.b32.xlu0 %v334, 64
    %v350 = vpop.permute.xlu0 %349
    %351 = vrot.lane.b32.xlu0 %v340, 64
    %v352 = vpop.permute.xlu0 %351
    %vm356 = vcmask 326656
    %v358 = vsel %vm356, %v130, 0
    %v361 = vsel %vm356, %v131, 0
    %v364 = vsel %vm356, %v132, 0
    %366 = vmatprep.subr.mxu0 0.0
    %367 = vmatpush1.msra.mxu0 %v242
    %368 = vmatprep.subr.mxu0 0.0
    %369 = vmatpush1.msra.mxu0 %v248
    %370 = vmatprep.subr.mxu0 0.0
    %371 = vmatpush1.msra.mxu0 %v328
    %372 = vmatprep.subr.mxu0 0.0
    %373 = vmatpush1.msra.mxu0 %v334
    %374 = vmatprep.subr.mxu0 0.0
    %375 = vmatpush1.msra.mxu0 %v340
    %376 = vmatprep.subr.mxu0 0.0
    %377 = vmatpush1.msra.mxu0 0.0
    %378 = vmatprep.subr.mxu0 0.0
    %379 = vmatpush1.msra.mxu0 0.0
    %380 = vmatprep.subr.mxu0 0.0
    %381 = vmatpush1.msra.mxu0 0.0
    %382 = vmatprep.subr.mxu0 0.0
    %383 = vmatpush1.msra.mxu0 0.0
    %384 = vmatprep.subr.mxu0 0.0
    %385 = vmatpush1.msra.mxu0 0.0
    %386 = vmatprep.subr.mxu0 0.0
    %387 = vmatpush1.msra.mxu0 0.0
    %388 = vmatprep.subr.mxu0 0.0
    %389 = vmatpush1.msra.mxu0 0.0
    %390 = vmatprep.subr.mxu0 0.0
    %391 = vmatpush1.msra.mxu0 0.0
    %392 = vmatprep.subr.mxu0 0.0
    %393 = vmatpush1.msra.mxu0 0.0
    %394 = vmatprep.subr.mxu0 0.0
    %395 = vmatpush1.msra.mxu0 0.0
    %396 = vmatprep.subr.mxu0 0.0
    %397 = vmatpush1.msra.mxu0 0.0
    %398 = vmatprep.subr.mxu0 0.0
    %399 = vmatpush1.msra.mxu0 0.0
    %400 = vmatprep.subr.mxu0 0.0
    %401 = vmatpush1.msra.mxu0 0.0
    %402 = vmatprep.subr.mxu0 0.0
    %403 = vmatpush1.msra.mxu0 0.0
    %404 = vmatprep.subr.mxu0 0.0
    %405 = vmatpush1.msra.mxu0 0.0
    %406 = vmatprep.subr.mxu0 0.0
    %407 = vmatpush1.msra.mxu0 0.0
    %408 = vmatprep.subr.mxu0 0.0
    %409 = vmatpush1.msra.mxu0 0.0
    %410 = vmatprep.subr.mxu0 0.0
    %411 = vmatpush1.msra.mxu0 0.0
    %412 = vmatprep.subr.mxu0 0.0
    %413 = vmatpush1.msra.mxu0 0.0
    %414 = vmatprep.subr.mxu0 0.0
    %415 = vmatpush1.msra.mxu0 0.0
    %416 = vmatprep.subr.mxu0 0.0
    %417 = vmatpush1.msra.mxu0 0.0
    %418 = vmatprep.subr.mxu0 0.0
    %419 = vmatpush1.msra.mxu0 0.0
    %420 = vmatprep.subr.mxu0 0.0
    %421 = vmatpush1.msra.mxu0 0.0
    %422 = vmatprep.subr.mxu0 0.0
    %423 = vmatpush1.msra.mxu0 0.0
    %424 = vmatprep.subr.mxu0 0.0
    %425 = vmatpush1.msra.mxu0 0.0
    %426 = vmatprep.subr.mxu0 0.0
    %427 = vmatpush1.msra.mxu0 0.0
    %428 = vmatprep.subr.mxu0 0.0
    %429 = vmatpush1.msra.mxu0 0.0
    %430 = vmatprep.mubr.f32.mxu0 0.0
    %431 = vmatmul.mubr.f32.gmra.mrb[0].mxu0 %v358
    %v432 = vpop.f32.mrb[0].mxu0
    %v433 = vadd.f32 %v348, %v432
    %v434 = vpop.f32.mrb[0].mxu0
    %435 = vmatprep.mubr.f32.mxu0 0.0
    %436 = vmatmul.mubr.f32.gmra.mrb[0].mxu0 %v361
    %v437 = vpop.f32.mrb[0].mxu0
    %v438 = vadd.f32 %v350, %v437
    %v439 = vpop.f32.mrb[0].mxu0
    %440 = vmatprep.mubr.f32.mxu0 0.0
    %441 = vmatmul.mubr.f32.gmra.mrb[0].mxu0 %v364
    %v442 = vpop.f32.mrb[0].mxu0
    %v443 = vadd.f32 %v352, %v442
    %v444 = vpop.f32.mrb[0].mxu0
    %445 = vdwg.mxu0
    %v446 = vlaneseq
    %v447 = vshrl.u32 %v446, 7
    %v448 = vsub.s32 1, %v447
    %v449 = vrot.slane %v135, %v448
    %v450 = vadd.f32 %v433, %v449
    %v451 = vadd.f32 %v438, %v449
    %v452 = vadd.f32 %v443, %v449
    %455 = vrot.lane.b32.xlu0 %v242, 64
    %v456 = vpop.permute.xlu0 %455
    %457 = vrot.lane.b32.xlu0 %v248, 64
    %v458 = vpop.permute.xlu0 %457
    %vm461 = vcmask 130048
    %v463 = vsel %vm461, %v133, 0
    %v466 = vsel %vm461, %v134, 0
    %468 = vmatprep.subr.mxu0 0.0
    %469 = vmatpush1.msra.mxu0 %v456
    %470 = vmatprep.subr.mxu0 0.0
    %471 = vmatpush1.msra.mxu0 %v458
    %472 = vmatprep.subr.mxu0 0.0
    %473 = vmatpush1.msra.mxu0 0.0
    %474 = vmatprep.subr.mxu0 0.0
    %475 = vmatpush1.msra.mxu0 0.0
    %476 = vmatprep.subr.mxu0 0.0
    %477 = vmatpush1.msra.mxu0 0.0
    %478 = vmatprep.subr.mxu0 0.0
    %479 = vmatpush1.msra.mxu0 0.0
    %480 = vmatprep.subr.mxu0 0.0
    %481 = vmatpush1.msra.mxu0 0.0
    %482 = vmatprep.subr.mxu0 0.0
    %483 = vmatpush1.msra.mxu0 0.0
    %484 = vmatprep.subr.mxu0 0.0
    %485 = vmatpush1.msra.mxu0 0.0
    %486 = vmatprep.subr.mxu0 0.0
    %487 = vmatpush1.msra.mxu0 0.0
    %488 = vmatprep.subr.mxu0 0.0
    %489 = vmatpush1.msra.mxu0 0.0
    %490 = vmatprep.subr.mxu0 0.0
    %491 = vmatpush1.msra.mxu0 0.0
    %492 = vmatprep.subr.mxu0 0.0
    %493 = vmatpush1.msra.mxu0 0.0
    %494 = vmatprep.subr.mxu0 0.0
    %495 = vmatpush1.msra.mxu0 0.0
    %496 = vmatprep.subr.mxu0 0.0
    %497 = vmatpush1.msra.mxu0 0.0
    %498 = vmatprep.subr.mxu0 0.0
    %499 = vmatpush1.msra.mxu0 0.0
    %500 = vmatprep.subr.mxu0 0.0
    %501 = vmatpush1.msra.mxu0 0.0
    %502 = vmatprep.subr.mxu0 0.0
    %503 = vmatpush1.msra.mxu0 0.0
    %504 = vmatprep.subr.mxu0 0.0
    %505 = vmatpush1.msra.mxu0 0.0
    %506 = vmatprep.subr.mxu0 0.0
    %507 = vmatpush1.msra.mxu0 0.0
    %508 = vmatprep.subr.mxu0 0.0
    %509 = vmatpush1.msra.mxu0 0.0
    %510 = vmatprep.subr.mxu0 0.0
    %511 = vmatpush1.msra.mxu0 0.0
    %512 = vmatprep.subr.mxu0 0.0
    %513 = vmatpush1.msra.mxu0 0.0
    %514 = vmatprep.subr.mxu0 0.0
    %515 = vmatpush1.msra.mxu0 0.0
    %516 = vmatprep.subr.mxu0 0.0
    %517 = vmatpush1.msra.mxu0 0.0
    %518 = vmatprep.subr.mxu0 0.0
    %519 = vmatpush1.msra.mxu0 0.0
    %520 = vmatprep.subr.mxu0 0.0
    %521 = vmatpush1.msra.mxu0 0.0
    %522 = vmatprep.subr.mxu0 0.0
    %523 = vmatpush1.msra.mxu0 0.0
    %524 = vmatprep.subr.mxu0 0.0
    %525 = vmatpush1.msra.mxu0 0.0
    %526 = vmatprep.subr.mxu0 0.0
    %527 = vmatpush1.msra.mxu0 0.0
    %528 = vmatprep.subr.mxu0 0.0
    %529 = vmatpush1.msra.mxu0 0.0
    %530 = vmatprep.subr.mxu0 0.0
    %531 = vmatpush1.msra.mxu0 0.0
    %532 = vmatprep.mubr.f32.mxu0 0.0
    %533 = vmatmul.mubr.f32.gmra.mrb[0].mxu0 %v463
    %v534 = vpop.f32.mrb[0].mxu0
    %v535 = vadd.f32 %v244, %v534
    %v536 = vpop.f32.mrb[0].mxu0
    %537 = vmatprep.mubr.f32.mxu0 0.0
    %538 = vmatmul.mubr.f32.gmra.mrb[0].mxu0 %v466
    %v539 = vpop.f32.mrb[0].mxu0
    %v540 = vadd.f32 %v250, %v539
    %v541 = vpop.f32.mrb[0].mxu0
    %542 = vdwg.mxu0
    %v543 = vlaneseq
    %v544 = vshrl.u32 %v543, 7
    %v545 = vsub.s32 0, %v544
    %v546 = vrot.slane %v135, %v545
    %v547 = vadd.f32 %v535, %v546
    %v548 = vadd.f32 %v540, %v546
    %v549 = vlaneseq
    %v550 = vshrl.u32 %v549, 7
    %v551 = vsub.s32 2, %v550
    %v552 = vrot.slane %v135, %v551
    %554 = vrot.lane.b32.xlu0 %v552, 64
    %v555 = vpop.permute.xlu0 %554
    %v557 = vadd.f32 %v244, %v555
    %v558 = vadd.f32 %v250, %v555
    %v559 = vlaneseq
    %v560 = vshrl.u32 %v559, 7
    %v561 = vsub.s32 3, %v560
    %v562 = vrot.slane %v135, %v561
    %v563 = vadd.f32 %v330, %v562
    %v564 = vadd.f32 %v336, %v562
    %v565 = vadd.f32 %v342, %v562
    %v566 = vmax.f32 %v547, 0.0
    %v567 = vmax.f32 %v548, 0.0
    %v568 = vmax.f32 %v450, 0.0
    %v569 = vmax.f32 %v451, 0.0
    %v570 = vmax.f32 %v452, 0.0
    %v571 = vld [vmem:[#allocation10] sm:$0xff]
    %v572 = vld [vmem:[#allocation10 + $0x8] sm:$0xff]
    %v573 = vld [vmem:[#allocation10 + $0x10] sm:$0xff]
    %v574 = vld [vmem:[#allocation10 + $0x18] sm:$0xff]
    %v575 = vld [vmem:[#allocation10 + $0x20] sm:$0xff]
    %v576 = vld [vmem:[#allocation10 + $0x28] sm:$0xff]
    %v577 = vld [vmem:[#allocation10 + $0x30] sm:$0xff]
    %v578 = vld [vmem:[#allocation10 + $0x38] sm:$0xff]
    %v579 = vld [vmem:[#allocation10 + $0x40] sm:$0xff]
    %v580 = vld [vmem:[#allocation10 + $0x48] sm:$0xff]
    %v581 = vld [vmem:[#allocation10 + $0x50] sm:$0xff]
    %v582 = vld [vmem:[#allocation10 + $0x58] sm:$0xff]
    %v583 = vld [vmem:[#allocation10 + $0x60] sm:$0xff]
    %v584 = vld [vmem:[#allocation10 + $0x68] sm:$0xff]
    %v585 = vld [vmem:[#allocation10 + $0x70] sm:$0xff]
    %v586 = vld [vmem:[#allocation10 + $0x78] sm:$0xff]
    %v587 = vld [vmem:[#allocation11] sm:$0xff]
    %v588 = vld [vmem:[#allocation11 + $0x8] sm:$0xff]
    %v589 = vld [vmem:[#allocation11 + $0x10] sm:$0xff]
    %v590 = vld [vmem:[#allocation11 + $0x18] sm:$0xff]
    %v591 = vld [vmem:[#allocation11 + $0x20] sm:$0xff]
    %v592 = vld [vmem:[#allocation11 + $0x28] sm:$0xff]
    %v593 = vld [vmem:[#allocation11 + $0x30] sm:$0xff]
    %v594 = vld [vmem:[#allocation11 + $0x38] sm:$0xff]
    %v596 = vsel %vm168, %v566, 0
    %v599 = vsel %vm168, %v567, 0
    %601 = vmatprep.subr.mxu0 %v572
    %602 = vmatpush1.msra.mxu0 %v571
    %603 = vmatprep.subr.mxu0 %v574
    %604 = vmatpush1.msra.mxu0 %v573
    %605 = vmatprep.subr.mxu0 %v576
    %606 = vmatpush1.msra.mxu0 %v575
    %607 = vmatprep.subr.mxu0 %v578
    %608 = vmatpush1.msra.mxu0 %v577
    %609 = vmatprep.subr.mxu0 %v580
    %610 = vmatpush1.msra.mxu0 %v579
    %611 = vmatprep.subr.mxu0 %v582
    %612 = vmatpush1.msra.mxu0 %v581
    %613 = vmatprep.subr.mxu0 %v584
    %614 = vmatpush1.msra.mxu0 %v583
    %615 = vmatprep.subr.mxu0 %v586
    %616 = vmatpush1.msra.mxu0 %v585
    %617 = vmatprep.subr.mxu0 0.0
    %618 = vmatpush1.msra.mxu0 0.0
    %619 = vmatprep.subr.mxu0 0.0
    %620 = vmatpush1.msra.mxu0 0.0
    %621 = vmatprep.subr.mxu0 0.0
    %622 = vmatpush1.msra.mxu0 0.0
    %623 = vmatprep.subr.mxu0 0.0
    %624 = vmatpush1.msra.mxu0 0.0
    %625 = vmatprep.subr.mxu0 0.0
    %626 = vmatpush1.msra.mxu0 0.0
    %627 = vmatprep.subr.mxu0 0.0
    %628 = vmatpush1.msra.mxu0 0.0
    %629 = vmatprep.subr.mxu0 0.0
    %630 = vmatpush1.msra.mxu0 0.0
    %631 = vmatprep.subr.mxu0 0.0
    %632 = vmatpush1.msra.mxu0 0.0
    %633 = vmatprep.subr.mxu0 0.0
    %634 = vmatpush1.msra.mxu0 0.0
    %635 = vmatprep.subr.mxu0 0.0
    %636 = vmatpush1.msra.mxu0 0.0
    %637 = vmatprep.subr.mxu0 0.0
    %638 = vmatpush1.msra.mxu0 0.0
    %639 = vmatprep.subr.mxu0 0.0
    %640 = vmatpush1.msra.mxu0 0.0
    %641 = vmatprep.subr.mxu0 0.0
    %642 = vmatpush1.msra.mxu0 0.0
    %643 = vmatprep.subr.mxu0 0.0
    %644 = vmatpush1.msra.mxu0 0.0
    %645 = vmatprep.subr.mxu0 0.0
    %646 = vmatpush1.msra.mxu0 0.0
    %647 = vmatprep.subr.mxu0 0.0
    %648 = vmatpush1.msra.mxu0 0.0
    %649 = vmatprep.subr.mxu0 0.0
    %650 = vmatpush1.msra.mxu0 0.0
    %651 = vmatprep.subr.mxu0 0.0
    %652 = vmatpush1.msra.mxu0 0.0
    %653 = vmatprep.subr.mxu0 0.0
    %654 = vmatpush1.msra.mxu0 0.0
    %655 = vmatprep.subr.mxu0 0.0
    %656 = vmatpush1.msra.mxu0 0.0
    %657 = vmatprep.subr.mxu0 0.0
    %658 = vmatpush1.msra.mxu0 0.0
    %659 = vmatprep.subr.mxu0 0.0
    %660 = vmatpush1.msra.mxu0 0.0
    %661 = vmatprep.subr.mxu0 0.0
    %662 = vmatpush1.msra.mxu0 0.0
    %663 = vmatprep.subr.mxu0 0.0
    %664 = vmatpush1.msra.mxu0 0.0
    %665 = vmatprep.mubr.f32.mxu0 0.0
    %666 = vmatmul.mubr.f32.gmra.mrb[0].mxu0 %v596
    %v667 = vpop.f32.mrb[0].mxu0
    %v668 = vadd.f32 0.0, %v667
    %v669 = vpop.f32.mrb[0].mxu0
    %v670 = vadd.f32 0.0, %v669
    %671 = vmatprep.mubr.f32.mxu0 0.0
    %672 = vmatmul.mubr.f32.gmra.mrb[0].mxu0 %v599
    %v673 = vpop.f32.mrb[0].mxu0
    %v674 = vadd.f32 0.0, %v673
    %v675 = vpop.f32.mrb[0].mxu0
    %v676 = vadd.f32 0.0, %v675
    %677 = vdwg.mxu0
    %v679 = vsel %vm168, %v568, 0
    %v682 = vsel %vm168, %v569, 0
    %v685 = vsel %vm168, %v570, 0
    %687 = vmatprep.subr.mxu0 0.0
    %688 = vmatpush1.msra.mxu0 %v587
    %689 = vmatprep.subr.mxu0 0.0
    %690 = vmatpush1.msra.mxu0 %v588
    %691 = vmatprep.subr.mxu0 0.0
    %692 = vmatpush1.msra.mxu0 %v589
    %693 = vmatprep.subr.mxu0 0.0
    %694 = vmatpush1.msra.mxu0 %v590
    %695 = vmatprep.subr.mxu0 0.0
    %696 = vmatpush1.msra.mxu0 %v591
    %697 = vmatprep.subr.mxu0 0.0
    %698 = vmatpush1.msra.mxu0 %v592
    %699 = vmatprep.subr.mxu0 0.0
    %700 = vmatpush1.msra.mxu0 %v593
    %701 = vmatprep.subr.mxu0 0.0
    %702 = vmatpush1.msra.mxu0 %v594
    %703 = vmatprep.subr.mxu0 0.0
    %704 = vmatpush1.msra.mxu0 0.0
    %705 = vmatprep.subr.mxu0 0.0
    %706 = vmatpush1.msra.mxu0 0.0
    %707 = vmatprep.subr.mxu0 0.0
    %708 = vmatpush1.msra.mxu0 0.0
    %709 = vmatprep.subr.mxu0 0.0
    %710 = vmatpush1.msra.mxu0 0.0
    %711 = vmatprep.subr.mxu0 0.0
    %712 = vmatpush1.msra.mxu0 0.0
    %713 = vmatprep.subr.mxu0 0.0
    %714 = vmatpush1.msra.mxu0 0.0
    %715 = vmatprep.subr.mxu0 0.0
    %716 = vmatpush1.msra.mxu0 0.0
    %717 = vmatprep.subr.mxu0 0.0
    %718 = vmatpush1.msra.mxu0 0.0
    %719 = vmatprep.subr.mxu0 0.0
    %720 = vmatpush1.msra.mxu0 0.0
    %721 = vmatprep.subr.mxu0 0.0
    %722 = vmatpush1.msra.mxu0 0.0
    %723 = vmatprep.subr.mxu0 0.0
    %724 = vmatpush1.msra.mxu0 0.0
    %725 = vmatprep.subr.mxu0 0.0
    %726 = vmatpush1.msra.mxu0 0.0
    %727 = vmatprep.subr.mxu0 0.0
    %728 = vmatpush1.msra.mxu0 0.0
    %729 = vmatprep.subr.mxu0 0.0
    %730 = vmatpush1.msra.mxu0 0.0
    %731 = vmatprep.subr.mxu0 0.0
    %732 = vmatpush1.msra.mxu0 0.0
    %733 = vmatprep.subr.mxu0 0.0
    %734 = vmatpush1.msra.mxu0 0.0
    %735 = vmatprep.subr.mxu0 0.0
    %736 = vmatpush1.msra.mxu0 0.0
    %737 = vmatprep.subr.mxu0 0.0
    %738 = vmatpush1.msra.mxu0 0.0
    %739 = vmatprep.subr.mxu0 0.0
    %740 = vmatpush1.msra.mxu0 0.0
    %741 = vmatprep.subr.mxu0 0.0
    %742 = vmatpush1.msra.mxu0 0.0
    %743 = vmatprep.subr.mxu0 0.0
    %744 = vmatpush1.msra.mxu0 0.0
    %745 = vmatprep.subr.mxu0 0.0
    %746 = vmatpush1.msra.mxu0 0.0
    %747 = vmatprep.subr.mxu0 0.0
    %748 = vmatpush1.msra.mxu0 0.0
    %749 = vmatprep.subr.mxu0 0.0
    %750 = vmatpush1.msra.mxu0 0.0
    %751 = vmatprep.mubr.f32.mxu0 0.0
    %752 = vmatmul.mubr.f32.gmra.mrb[0].mxu0 %v679
    %v753 = vpop.f32.mrb[0].mxu0
    %v754 = vadd.f32 0.0, %v753
    %v755 = vpop.f32.mrb[0].mxu0
    %756 = vmatprep.mubr.f32.mxu0 0.0
    %757 = vmatmul.mubr.f32.gmra.mrb[0].mxu0 %v682
    %v758 = vpop.f32.mrb[0].mxu0
    %v759 = vadd.f32 0.0, %v758
    %v760 = vpop.f32.mrb[0].mxu0
    %761 = vmatprep.mubr.f32.mxu0 0.0
    %762 = vmatmul.mubr.f32.gmra.mrb[0].mxu0 %v685
    %v763 = vpop.f32.mrb[0].mxu0
    %v764 = vadd.f32 0.0, %v763
    %v765 = vpop.f32.mrb[0].mxu0
    %766 = vdwg.mxu0
    %770 = vrot.lane.b32.xlu0 %v754, 64
    %v771 = vpop.permute.xlu0 %770
    %772 = vrot.lane.b32.xlu0 %v759, 64
    %v773 = vpop.permute.xlu0 %772
    %774 = vrot.lane.b32.xlu0 %v764, 64
    %v775 = vpop.permute.xlu0 %774
    %779 = vmatprep.subr.mxu0 0.0
    %780 = vmatpush1.msra.mxu0 %v668
    %781 = vmatprep.subr.mxu0 0.0
    %782 = vmatpush1.msra.mxu0 %v674
    %783 = vmatprep.subr.mxu0 0.0
    %784 = vmatpush1.msra.mxu0 %v754
    %785 = vmatprep.subr.mxu0 0.0
    %786 = vmatpush1.msra.mxu0 %v759
    %787 = vmatprep.subr.mxu0 0.0
    %788 = vmatpush1.msra.mxu0 %v764
    %789 = vmatprep.subr.mxu0 0.0
    %790 = vmatpush1.msra.mxu0 0.0
    %791 = vmatprep.subr.mxu0 0.0
    %792 = vmatpush1.msra.mxu0 0.0
    %793 = vmatprep.subr.mxu0 0.0
    %794 = vmatpush1.msra.mxu0 0.0
    %795 = vmatprep.subr.mxu0 0.0
    %796 = vmatpush1.msra.mxu0 0.0
    %797 = vmatprep.subr.mxu0 0.0
    %798 = vmatpush1.msra.mxu0 0.0
    %799 = vmatprep.subr.mxu0 0.0
    %800 = vmatpush1.msra.mxu0 0.0
    %801 = vmatprep.subr.mxu0 0.0
    %802 = vmatpush1.msra.mxu0 0.0
    %803 = vmatprep.subr.mxu0 0.0
    %804 = vmatpush1.msra.mxu0 0.0
    %805 = vmatprep.subr.mxu0 0.0
    %806 = vmatpush1.msra.mxu0 0.0
    %807 = vmatprep.subr.mxu0 0.0
    %808 = vmatpush1.msra.mxu0 0.0
    %809 = vmatprep.subr.mxu0 0.0
    %810 = vmatpush1.msra.mxu0 0.0
    %811 = vmatprep.subr.mxu0 0.0
    %812 = vmatpush1.msra.mxu0 0.0
    %813 = vmatprep.subr.mxu0 0.0
    %814 = vmatpush1.msra.mxu0 0.0
    %815 = vmatprep.subr.mxu0 0.0
    %816 = vmatpush1.msra.mxu0 0.0
    %817 = vmatprep.subr.mxu0 0.0
    %818 = vmatpush1.msra.mxu0 0.0
    %819 = vmatprep.subr.mxu0 0.0
    %820 = vmatpush1.msra.mxu0 0.0
    %821 = vmatprep.subr.mxu0 0.0
    %822 = vmatpush1.msra.mxu0 0.0
    %823 = vmatprep.subr.mxu0 0.0
    %824 = vmatpush1.msra.mxu0 0.0
    %825 = vmatprep.subr.mxu0 0.0
    %826 = vmatpush1.msra.mxu0 0.0
    %827 = vmatprep.subr.mxu0 0.0
    %828 = vmatpush1.msra.mxu0 0.0
    %829 = vmatprep.subr.mxu0 0.0
    %830 = vmatpush1.msra.mxu0 0.0
    %831 = vmatprep.subr.mxu0 0.0
    %832 = vmatpush1.msra.mxu0 0.0
    %833 = vmatprep.subr.mxu0 0.0
    %834 = vmatpush1.msra.mxu0 0.0
    %835 = vmatprep.subr.mxu0 0.0
    %836 = vmatpush1.msra.mxu0 0.0
    %837 = vmatprep.subr.mxu0 0.0
    %838 = vmatpush1.msra.mxu0 0.0
    %839 = vmatprep.subr.mxu0 0.0
    %840 = vmatpush1.msra.mxu0 0.0
    %841 = vmatprep.subr.mxu0 0.0
    %842 = vmatpush1.msra.mxu0 0.0
    %843 = vmatprep.mubr.f32.mxu0 0.0
    %844 = vmatmul.mubr.f32.gmra.mrb[0].mxu0 %v358
    %v845 = vpop.f32.mrb[0].mxu0
    %v846 = vadd.f32 %v771, %v845
    %v847 = vpop.f32.mrb[0].mxu0
    %848 = vmatprep.mubr.f32.mxu0 0.0
    %849 = vmatmul.mubr.f32.gmra.mrb[0].mxu0 %v361
    %v850 = vpop.f32.mrb[0].mxu0
    %v851 = vadd.f32 %v773, %v850
    %v852 = vpop.f32.mrb[0].mxu0
    %853 = vmatprep.mubr.f32.mxu0 0.0
    %854 = vmatmul.mubr.f32.gmra.mrb[0].mxu0 %v364
    %v855 = vpop.f32.mrb[0].mxu0
    %v856 = vadd.f32 %v775, %v855
    %v857 = vpop.f32.mrb[0].mxu0
    %858 = vdwg.mxu0
    %v859 = vlaneseq
    %v860 = vshrl.u32 %v859, 7
    %v861 = vsub.s32 5, %v860
    %v862 = vrot.slane %v135, %v861
    %v863 = vadd.f32 %v846, %v862
    %v864 = vadd.f32 %v851, %v862
    %v865 = vadd.f32 %v856, %v862
    %868 = vrot.lane.b32.xlu0 %v668, 64
    %v869 = vpop.permute.xlu0 %868
    %870 = vrot.lane.b32.xlu0 %v674, 64
    %v871 = vpop.permute.xlu0 %870
    %874 = vmatprep.subr.mxu0 0.0
    %875 = vmatpush1.msra.mxu0 %v869
    %876 = vmatprep.subr.mxu0 0.0
    %877 = vmatpush1.msra.mxu0 %v871
    %878 = vmatprep.subr.mxu0 0.0
    %879 = vmatpush1.msra.mxu0 0.0
    %880 = vmatprep.subr.mxu0 0.0
    %881 = vmatpush1.msra.mxu0 0.0
    %882 = vmatprep.subr.mxu0 0.0
    %883 = vmatpush1.msra.mxu0 0.0
    %884 = vmatprep.subr.mxu0 0.0
    %885 = vmatpush1.msra.mxu0 0.0
    %886 = vmatprep.subr.mxu0 0.0
    %887 = vmatpush1.msra.mxu0 0.0
    %888 = vmatprep.subr.mxu0 0.0
    %889 = vmatpush1.msra.mxu0 0.0
    %890 = vmatprep.subr.mxu0 0.0
    %891 = vmatpush1.msra.mxu0 0.0
    %892 = vmatprep.subr.mxu0 0.0
    %893 = vmatpush1.msra.mxu0 0.0
    %894 = vmatprep.subr.mxu0 0.0
    %895 = vmatpush1.msra.mxu0 0.0
    %896 = vmatprep.subr.mxu0 0.0
    %897 = vmatpush1.msra.mxu0 0.0
    %898 = vmatprep.subr.mxu0 0.0
    %899 = vmatpush1.msra.mxu0 0.0
    %900 = vmatprep.subr.mxu0 0.0
    %901 = vmatpush1.msra.mxu0 0.0
    %902 = vmatprep.subr.mxu0 0.0
    %903 = vmatpush1.msra.mxu0 0.0
    %904 = vmatprep.subr.mxu0 0.0
    %905 = vmatpush1.msra.mxu0 0.0
    %906 = vmatprep.subr.mxu0 0.0
    %907 = vmatpush1.msra.mxu0 0.0
    %908 = vmatprep.subr.mxu0 0.0
    %909 = vmatpush1.msra.mxu0 0.0
    %910 = vmatprep.subr.mxu0 0.0
    %911 = vmatpush1.msra.mxu0 0.0
    %912 = vmatprep.subr.mxu0 0.0
    %913 = vmatpush1.msra.mxu0 0.0
    %914 = vmatprep.subr.mxu0 0.0
    %915 = vmatpush1.msra.mxu0 0.0
    %916 = vmatprep.subr.mxu0 0.0
    %917 = vmatpush1.msra.mxu0 0.0
    %918 = vmatprep.subr.mxu0 0.0
    %919 = vmatpush1.msra.mxu0 0.0
    %920 = vmatprep.subr.mxu0 0.0
    %921 = vmatpush1.msra.mxu0 0.0
    %922 = vmatprep.subr.mxu0 0.0
    %923 = vmatpush1.msra.mxu0 0.0
    %924 = vmatprep.subr.mxu0 0.0
    %925 = vmatpush1.msra.mxu0 0.0
    %926 = vmatprep.subr.mxu0 0.0
    %927 = vmatpush1.msra.mxu0 0.0
    %928 = vmatprep.subr.mxu0 0.0
    %929 = vmatpush1.msra.mxu0 0.0
    %930 = vmatprep.subr.mxu0 0.0
    %931 = vmatpush1.msra.mxu0 0.0
    %932 = vmatprep.subr.mxu0 0.0
    %933 = vmatpush1.msra.mxu0 0.0
    %934 = vmatprep.subr.mxu0 0.0
    %935 = vmatpush1.msra.mxu0 0.0
    %936 = vmatprep.subr.mxu0 0.0
    %937 = vmatpush1.msra.mxu0 0.0
    %938 = vmatprep.mubr.f32.mxu0 0.0
    %939 = vmatmul.mubr.f32.gmra.mrb[0].mxu0 %v463
    %v940 = vpop.f32.mrb[0].mxu0
    %v941 = vadd.f32 %v670, %v940
    %v942 = vpop.f32.mrb[0].mxu0
    %943 = vmatprep.mubr.f32.mxu0 0.0
    %944 = vmatmul.mubr.f32.gmra.mrb[0].mxu0 %v466
    %v945 = vpop.f32.mrb[0].mxu0
    %v946 = vadd.f32 %v676, %v945
    %v947 = vpop.f32.mrb[0].mxu0
    %948 = vdwg.mxu0
    %v949 = vlaneseq
    %v950 = vshrl.u32 %v949, 7
    %v951 = vsub.s32 4, %v950
    %v952 = vrot.slane %v135, %v951
    %v953 = vadd.f32 %v941, %v952
    %v954 = vadd.f32 %v946, %v952
    %v955 = vmax.f32 %v953, 0.0
    %v956 = vmax.f32 %v954, 0.0
    %959 = vrot.lane.b32.xlu0 %v557, 64
    %v960 = vpop.permute.xlu0 %959
    %961 = vrot.lane.b32.xlu0 %v558, 64
    %v962 = vpop.permute.xlu0 %961
    %v965 = vadd.f32 %v955, %v960
    %v966 = vadd.f32 %v956, %v962
    %v967 = vmax.f32 %v863, 0.0
    %v968 = vmax.f32 %v864, 0.0
    %v969 = vmax.f32 %v865, 0.0
    %v970 = vadd.f32 %v967, %v563
    %v971 = vadd.f32 %v968, %v564
    %v972 = vadd.f32 %v969, %v565
    %v973 = vlaneseq
    %v974 = vshrl.u32 %v973, 7
    %v975 = vadd.s32 %v974, 8
    %v976 = vadd.s32 %v974, 16
    %vm977 = vcmp.lt.s32.totalorder %v974, 12
    %vm978 = vcmp.lt.s32.totalorder %v975, 12
    %v979 = vsel %vm977, %v965, 0.0
    %v980 = vsel %vm978, %v966, 0.0
    %v981 = vsel %vm168, %v979, 0.0
    %v982 = vsel %vm168, %v980, 0.0
    %v983 = vadd.f32 %v981, %v982
    %v984 = vrot.slane %v983, 4
    %v985 = vadd.f32 %v983, %v984
    %v986 = vrot.slane %v985, 2
    %v987 = vadd.f32 %v985, %v986
    %v988 = vrot.slane %v987, 1
    %v989 = vadd.f32 %v987, %v988
    %v990 = vmul.f32 %v989, 0.083333336
    %vm991 = vcmp.lt.s32.totalorder %v974, 20
    %vm992 = vcmp.lt.s32.totalorder %v975, 20
    %vm993 = vcmp.lt.s32.totalorder %v976, 20
    %v994 = vsel %vm991, %v970, 0.0
    %v995 = vsel %vm992, %v971, 0.0
    %v996 = vsel %vm993, %v972, 0.0
    %v997 = vsel %vm168, %v994, 0.0
    %v998 = vsel %vm168, %v995, 0.0
    %v999 = vadd.f32 %v997, %v998
    %v1000 = vsel %vm168, %v996, 0.0
    %v1001 = vadd.f32 %v999, %v1000
    %v1002 = vrot.slane %v1001, 4
    %v1003 = vadd.f32 %v1001, %v1002
    %v1004 = vrot.slane %v1003, 2
    %v1005 = vadd.f32 %v1003, %v1004
    %v1006 = vrot.slane %v1005, 1
    %v1007 = vadd.f32 %v1005, %v1006
    %v1008 = vmul.f32 %v1007, 0.05
    %v1009 = vld [vmem:[#allocation13] sm:$0xff]
    %v1010 = vld [vmem:[#allocation13 + $0x8] sm:$0xff]
    %v1011 = vld [vmem:[#allocation13 + $0x10] sm:$0xff]
    %v1012 = vld [vmem:[#allocation13 + $0x18] sm:$0xff]
    %v1013 = vld [vmem:[#allocation13 + $0x20] sm:$0xff]
    %v1014 = vld [vmem:[#allocation13 + $0x28] sm:$0xff]
    %v1015 = vld [vmem:[#allocation13 + $0x30] sm:$0xff]
    %v1016 = vld [vmem:[#allocation13 + $0x38] sm:$0xff]
    %v1017 = vld [vmem:[#allocation13 + $0x40] sm:$0xff]
    %v1018 = vld [vmem:[#allocation13 + $0x48] sm:$0xff]
    %v1019 = vld [vmem:[#allocation13 + $0x50] sm:$0xff]
    %v1020 = vld [vmem:[#allocation13 + $0x58] sm:$0xff]
    %v1021 = vld [vmem:[#allocation13 + $0x60] sm:$0xff]
    %v1022 = vld [vmem:[#allocation13 + $0x68] sm:$0xff]
    %v1023 = vld [vmem:[#allocation13 + $0x70] sm:$0xff]
    %v1024 = vld [vmem:[#allocation13 + $0x78] sm:$0xff]
    %1033 = vrot.lane.b32.xlu0 %v1009, 64
    %v1034 = vpop.permute.xlu0 %1033
    %1035 = vrot.lane.b32.xlu0 %v1011, 64
    %v1036 = vpop.permute.xlu0 %1035
    %1037 = vrot.lane.b32.xlu0 %v1013, 64
    %v1038 = vpop.permute.xlu0 %1037
    %1039 = vrot.lane.b32.xlu0 %v1015, 64
    %v1040 = vpop.permute.xlu0 %1039
    %1041 = vrot.lane.b32.xlu0 %v1017, 64
    %v1042 = vpop.permute.xlu0 %1041
    %1043 = vrot.lane.b32.xlu0 %v1019, 64
    %v1044 = vpop.permute.xlu0 %1043
    %1045 = vrot.lane.b32.xlu0 %v1021, 64
    %v1046 = vpop.permute.xlu0 %1045
    %1047 = vrot.lane.b32.xlu0 %v1023, 64
    %v1048 = vpop.permute.xlu0 %1047
    %v1058 = vsel %vm168, %v1008, 0
    %1060 = vmatprep.subr.mxu0 0.0
    %1061 = vmatpush1.msra.mxu0 %v1034
    %1062 = vmatprep.subr.mxu0 0.0
    %1063 = vmatpush1.msra.mxu0 %v1036
    %1064 = vmatprep.subr.mxu0 0.0
    %1065 = vmatpush1.msra.mxu0 %v1038
    %1066 = vmatprep.subr.mxu0 0.0
    %1067 = vmatpush1.msra.mxu0 %v1040
    %1068 = vmatprep.subr.mxu0 0.0
    %1069 = vmatpush1.msra.mxu0 %v1042
    %1070 = vmatprep.subr.mxu0 0.0
    %1071 = vmatpush1.msra.mxu0 %v1044
    %1072 = vmatprep.subr.mxu0 0.0
    %1073 = vmatpush1.msra.mxu0 %v1046
    %1074 = vmatprep.subr.mxu0 0.0
    %1075 = vmatpush1.msra.mxu0 %v1048
    %1076 = vmatprep.subr.mxu0 0.0
    %1077 = vmatpush1.msra.mxu0 0.0
    %1078 = vmatprep.subr.mxu0 0.0
    %1079 = vmatpush1.msra.mxu0 0.0
    %1080 = vmatprep.subr.mxu0 0.0
    %1081 = vmatpush1.msra.mxu0 0.0
    %1082 = vmatprep.subr.mxu0 0.0
    %1083 = vmatpush1.msra.mxu0 0.0
    %1084 = vmatprep.subr.mxu0 0.0
    %1085 = vmatpush1.msra.mxu0 0.0
    %1086 = vmatprep.subr.mxu0 0.0
    %1087 = vmatpush1.msra.mxu0 0.0
    %1088 = vmatprep.subr.mxu0 0.0
    %1089 = vmatpush1.msra.mxu0 0.0
    %1090 = vmatprep.subr.mxu0 0.0
    %1091 = vmatpush1.msra.mxu0 0.0
    %1092 = vmatprep.subr.mxu0 0.0
    %1093 = vmatpush1.msra.mxu0 0.0
    %1094 = vmatprep.subr.mxu0 0.0
    %1095 = vmatpush1.msra.mxu0 0.0
    %1096 = vmatprep.subr.mxu0 0.0
    %1097 = vmatpush1.msra.mxu0 0.0
    %1098 = vmatprep.subr.mxu0 0.0
    %1099 = vmatpush1.msra.mxu0 0.0
    %1100 = vmatprep.subr.mxu0 0.0
    %1101 = vmatpush1.msra.mxu0 0.0
    %1102 = vmatprep.subr.mxu0 0.0
    %1103 = vmatpush1.msra.mxu0 0.0
    %1104 = vmatprep.subr.mxu0 0.0
    %1105 = vmatpush1.msra.mxu0 0.0
    %1106 = vmatprep.subr.mxu0 0.0
    %1107 = vmatpush1.msra.mxu0 0.0
    %1108 = vmatprep.subr.mxu0 0.0
    %1109 = vmatpush1.msra.mxu0 0.0
    %1110 = vmatprep.subr.mxu0 0.0
    %1111 = vmatpush1.msra.mxu0 0.0
    %1112 = vmatprep.subr.mxu0 0.0
    %1113 = vmatpush1.msra.mxu0 0.0
    %1114 = vmatprep.subr.mxu0 0.0
    %1115 = vmatpush1.msra.mxu0 0.0
    %1116 = vmatprep.subr.mxu0 0.0
    %1117 = vmatpush1.msra.mxu0 0.0
    %1118 = vmatprep.subr.mxu0 0.0
    %1119 = vmatpush1.msra.mxu0 0.0
    %1120 = vmatprep.subr.mxu0 0.0
    %1121 = vmatpush1.msra.mxu0 0.0
    %1122 = vmatprep.subr.mxu0 0.0
    %1123 = vmatpush1.msra.mxu0 0.0
    %1124 = vmatprep.mubr.f32.mxu0 0.0
    %1125 = vmatmul.mubr.f32.gmra.mrb[0].mxu0 %v1058
    %v1126 = vpop.f32.mrb[0].mxu0
    %v1127 = vadd.f32 0.0, %v1126
    %v1128 = vpop.f32.mrb[0].mxu0
    %1129 = vdwg.mxu0
    %v1131 = vsel %vm168, %v990, 0
    %1133 = vmatprep.subr.mxu0 0.0
    %1134 = vmatpush1.msra.mxu0 %v1009
    %1135 = vmatprep.subr.mxu0 0.0
    %1136 = vmatpush1.msra.mxu0 %v1011
    %1137 = vmatprep.subr.mxu0 0.0
    %1138 = vmatpush1.msra.mxu0 %v1013
    %1139 = vmatprep.subr.mxu0 0.0
    %1140 = vmatpush1.msra.mxu0 %v1015
    %1141 = vmatprep.subr.mxu0 0.0
    %1142 = vmatpush1.msra.mxu0 %v1017
    %1143 = vmatprep.subr.mxu0 0.0
    %1144 = vmatpush1.msra.mxu0 %v1019
    %1145 = vmatprep.subr.mxu0 0.0
    %1146 = vmatpush1.msra.mxu0 %v1021
    %1147 = vmatprep.subr.mxu0 0.0
    %1148 = vmatpush1.msra.mxu0 %v1023
    %1149 = vmatprep.subr.mxu0 0.0
    %1150 = vmatpush1.msra.mxu0 0.0
    %1151 = vmatprep.subr.mxu0 0.0
    %1152 = vmatpush1.msra.mxu0 0.0
    %1153 = vmatprep.subr.mxu0 0.0
    %1154 = vmatpush1.msra.mxu0 0.0
    %1155 = vmatprep.subr.mxu0 0.0
    %1156 = vmatpush1.msra.mxu0 0.0
    %1157 = vmatprep.subr.mxu0 0.0
    %1158 = vmatpush1.msra.mxu0 0.0
    %1159 = vmatprep.subr.mxu0 0.0
    %1160 = vmatpush1.msra.mxu0 0.0
    %1161 = vmatprep.subr.mxu0 0.0
    %1162 = vmatpush1.msra.mxu0 0.0
    %1163 = vmatprep.subr.mxu0 0.0
    %1164 = vmatpush1.msra.mxu0 0.0
    %1165 = vmatprep.subr.mxu0 0.0
    %1166 = vmatpush1.msra.mxu0 0.0
    %1167 = vmatprep.subr.mxu0 0.0
    %1168 = vmatpush1.msra.mxu0 0.0
    %1169 = vmatprep.subr.mxu0 0.0
    %1170 = vmatpush1.msra.mxu0 0.0
    %1171 = vmatprep.subr.mxu0 0.0
    %1172 = vmatpush1.msra.mxu0 0.0
    %1173 = vmatprep.subr.mxu0 0.0
    %1174 = vmatpush1.msra.mxu0 0.0
    %1175 = vmatprep.subr.mxu0 0.0
    %1176 = vmatpush1.msra.mxu0 0.0
    %1177 = vmatprep.subr.mxu0 0.0
    %1178 = vmatpush1.msra.mxu0 0.0
    %1179 = vmatprep.subr.mxu0 0.0
    %1180 = vmatpush1.msra.mxu0 0.0
    %1181 = vmatprep.subr.mxu0 0.0
    %1182 = vmatpush1.msra.mxu0 0.0
    %1183 = vmatprep.subr.mxu0 0.0
    %1184 = vmatpush1.msra.mxu0 0.0
    %1185 = vmatprep.subr.mxu0 0.0
    %1186 = vmatpush1.msra.mxu0 0.0
    %1187 = vmatprep.subr.mxu0 0.0
    %1188 = vmatpush1.msra.mxu0 0.0
    %1189 = vmatprep.subr.mxu0 0.0
    %1190 = vmatpush1.msra.mxu0 0.0
    %1191 = vmatprep.subr.mxu0 0.0
    %1192 = vmatpush1.msra.mxu0 0.0
    %1193 = vmatprep.subr.mxu0 0.0
    %1194 = vmatpush1.msra.mxu0 0.0
    %1195 = vmatprep.subr.mxu0 0.0
    %1196 = vmatpush1.msra.mxu0 0.0
    %1197 = vmatprep.mubr.f32.mxu0 0.0
    %1198 = vmatmul.mubr.f32.gmra.mrb[0].mxu0 %v1131
    %v1199 = vpop.f32.mrb[0].mxu0
    %v1200 = vadd.f32 %v1127, %v1199
    %v1201 = vpop.f32.mrb[0].mxu0
    %1202 = vdwg.mxu0
    %v1204 = vrot.slane %v135, 6
    %v1206 = vadd.f32 %v1200, %v1204
    %v1207 = vmax.f32 %v1206, 0.0
    %v1208 = vrot.slane %v135, 7
    %v1211 = vsel %vm168, %v1207, 0
    %1213 = vmatprep.subr.mxu0 0.0
    %1214 = vmatpush1.msra.mxu0 %v1010
    %1215 = vmatprep.subr.mxu0 0.0
    %1216 = vmatpush1.msra.mxu0 %v1012
    %1217 = vmatprep.subr.mxu0 0.0
    %1218 = vmatpush1.msra.mxu0 %v1014
    %1219 = vmatprep.subr.mxu0 0.0
    %1220 = vmatpush1.msra.mxu0 %v1016
    %1221 = vmatprep.subr.mxu0 0.0
    %1222 = vmatpush1.msra.mxu0 %v1018
    %1223 = vmatprep.subr.mxu0 0.0
    %1224 = vmatpush1.msra.mxu0 %v1020
    %1225 = vmatprep.subr.mxu0 0.0
    %1226 = vmatpush1.msra.mxu0 %v1022
    %1227 = vmatprep.subr.mxu0 0.0
    %1228 = vmatpush1.msra.mxu0 %v1024
    %1229 = vmatprep.subr.mxu0 0.0
    %1230 = vmatpush1.msra.mxu0 0.0
    %1231 = vmatprep.subr.mxu0 0.0
    %1232 = vmatpush1.msra.mxu0 0.0
    %1233 = vmatprep.subr.mxu0 0.0
    %1234 = vmatpush1.msra.mxu0 0.0
    %1235 = vmatprep.subr.mxu0 0.0
    %1236 = vmatpush1.msra.mxu0 0.0
    %1237 = vmatprep.subr.mxu0 0.0
    %1238 = vmatpush1.msra.mxu0 0.0
    %1239 = vmatprep.subr.mxu0 0.0
    %1240 = vmatpush1.msra.mxu0 0.0
    %1241 = vmatprep.subr.mxu0 0.0
    %1242 = vmatpush1.msra.mxu0 0.0
    %1243 = vmatprep.subr.mxu0 0.0
    %1244 = vmatpush1.msra.mxu0 0.0
    %1245 = vmatprep.subr.mxu0 0.0
    %1246 = vmatpush1.msra.mxu0 0.0
    %1247 = vmatprep.subr.mxu0 0.0
    %1248 = vmatpush1.msra.mxu0 0.0
    %1249 = vmatprep.subr.mxu0 0.0
    %1250 = vmatpush1.msra.mxu0 0.0
    %1251 = vmatprep.subr.mxu0 0.0
    %1252 = vmatpush1.msra.mxu0 0.0
    %1253 = vmatprep.subr.mxu0 0.0
    %1254 = vmatpush1.msra.mxu0 0.0
    %1255 = vmatprep.subr.mxu0 0.0
    %1256 = vmatpush1.msra.mxu0 0.0
    %1257 = vmatprep.subr.mxu0 0.0
    %1258 = vmatpush1.msra.mxu0 0.0
    %1259 = vmatprep.subr.mxu0 0.0
    %1260 = vmatpush1.msra.mxu0 0.0
    %1261 = vmatprep.subr.mxu0 0.0
    %1262 = vmatpush1.msra.mxu0 0.0
    %1263 = vmatprep.subr.mxu0 0.0
    %1264 = vmatpush1.msra.mxu0 0.0
    %1265 = vmatprep.subr.mxu0 0.0
    %1266 = vmatpush1.msra.mxu0 0.0
    %1267 = vmatprep.subr.mxu0 0.0
    %1268 = vmatpush1.msra.mxu0 0.0
    %1269 = vmatprep.subr.mxu0 0.0
    %1270 = vmatpush1.msra.mxu0 0.0
    %1271 = vmatprep.subr.mxu0 0.0
    %1272 = vmatpush1.msra.mxu0 0.0
    %1273 = vmatprep.subr.mxu0 0.0
    %1274 = vmatpush1.msra.mxu0 0.0
    %1275 = vmatprep.subr.mxu0 0.0
    %1276 = vmatpush1.msra.mxu0 0.0
    %1277 = vmatprep.mubr.f32.mxu0 0.0
    %1278 = vmatmul.mubr.f32.gmra.mrb[0].mxu0 %v1211
    %v1279 = vpop.f32.mrb[0].mxu0
    %v1280 = vadd.f32 %v1208, %v1279
    %v1281 = vpop.f32.mrb[0].mxu0
    %1282 = vdwg.mxu0
    %vm1283 = vcmask 8192
    %1284 = vst.msk [vmem:[#allocation14] sm:$0x1] %vm1283, %v1280
    // Predicated region
    $region62: #{tpu_custom_call.1} parent=1 // pred_check
      _
    $region63: #{tpu_custom_call.1} parent=1 // pred_check_branch
      %1286 = sbr.rel (0) target = $region65
    $region64: #{tpu_custom_call.1} parent=1 // pred_region
      %s1288 = ssub.s32 16, 16
      %1289 = vsyncadd [#allocation4], %s1288
      %s1291 = sshll.u32 [#allocation14], 4
      %s1292 = int_to_ptr.vmem [resolvable:$true] %s1291
      %1294 = dma.vmem_to_hbm [thread:$0]  %s1292, 16, %s8, [#allocation4]
    $region65: #{tpu_custom_call.1} parent=1 // pred_fallthru
      _
    // Predicated region
    $region66: #{tpu_custom_call.1} parent=1 // pred_check
      _
    $region67: #{tpu_custom_call.1} parent=1 // pred_check_branch
      %1296 = sbr.rel (0) target = $region69
    $region68: #{tpu_custom_call.1} parent=1 // pred_region
      %1297 = dma.done [#allocation4], 16
    $region69: #{tpu_custom_call.1} parent=1 // pred_fallthru
      _
    %1298 = vsyncpa [#allocation3], 1
    %1299 = vsyncpa [#allocation6], 1
    %1300 = vsyncpa [#allocation9], 1
    %1301 = vsyncpa [#allocation12], 1
    %1302 = vsyncpa [#allocation4], 1

</llo_original>
